<compile_context>
chip_gen: v7x
topology: tpu7x:2x2x1
jax: 0.10.0
libtpu: 0.0.40
codegen_flags: <defaults>
</compile_context>

<pallas_src>
import functools

import jax
import jax.numpy as jnp
import numpy as np
from jax.experimental import pallas as pl
from jax.experimental.pallas import tpu as pltpu


def _perceiver_attention_kernel(x_ref, lat_ref, g1_ref, b1_ref, g2_ref, b2_ref,
                                wq_ref, wk_ref, wv_ref, wo_ref, out_ref,
                                xn_s, ln_s, acc_s, *, compute_dtype):
    eps = 1e-5  # PyTorch nn.LayerNorm default
    f32 = jnp.float32
    cd = compute_dtype
    h = pl.program_id(1)

    # ---- once per batch element: LayerNorms (f32) + accumulator init ----------
    @pl.when(h == 0)
    def _init():
        def layernorm(t, g, b):
            t = t.astype(f32)
            mu = jnp.mean(t, axis=-1, keepdims=True)
            var = jnp.mean(jnp.square(t - mu), axis=-1, keepdims=True)
            return (t - mu) * jax.lax.rsqrt(var + eps) * g.astype(f32) + b.astype(f32)

        xn_s[...] = layernorm(x_ref[...], g1_ref[...], b1_ref[...]).astype(xn_s.dtype)
        ln_s[...] = layernorm(lat_ref[...], g2_ref[...], b2_ref[...]).astype(ln_s.dtype)
        acc_s[...] = jnp.zeros_like(acc_s)

    # ---- per-head weight tiles: leading-dim index on resident VMEM refs -------
    wq_h = wq_ref[h]   # (D, dh)   (attention scale pre-folded on host)
    wk_h = wk_ref[h]   # (D, dh)   (attention scale pre-folded on host)
    wv_h = wv_ref[h]   # (D, dh)
    wo_h = wo_ref[h]   # (dh, D)

    xn = xn_s[...]     # (N1, D), compute dtype
    ln = ln_s[...]     # (N2, D), compute dtype

    dot = functools.partial(jnp.dot, preferred_element_type=f32)

    # Projections (bias-free). x and latents projected separately -> no concat.
    q = dot(ln, wq_h)      # (N2, dh) f32
    k_x = dot(xn, wk_h)    # (N1, dh)
    k_l = dot(ln, wk_h)    # (N2, dh)
    v_x = dot(xn, wv_h)    # (N1, dh)
    v_l = dot(ln, wv_h)    # (N2, dh)

    # q @ k^T over the two key segments ('qd,kd->qk', contraction on last dims).
    nt_dims = (((1,), (1,)), ((), ()))
    s_x = jax.lax.dot_general(q.astype(cd), k_x.astype(cd), nt_dims,
                              preferred_element_type=f32)      # (N2, N1)
    s_l = jax.lax.dot_general(q.astype(cd), k_l.astype(cd), nt_dims,
                              preferred_element_type=f32)      # (N2, N2)

    # f32 softmax shared across both segments (identical to softmax over concat).
    m = jnp.maximum(jnp.max(s_x, axis=-1, keepdims=True),
                    jnp.max(s_l, axis=-1, keepdims=True))      # (N2, 1)
    p_x = jnp.exp(s_x - m)
    p_l = jnp.exp(s_l - m)
    denom = jnp.sum(p_x, axis=-1, keepdims=True) + jnp.sum(p_l, axis=-1, keepdims=True)
    inv = pl.reciprocal(denom, approx=True)                    # EUP slot

    o = (dot(p_x.astype(cd), v_x.astype(cd)) +
         dot(p_l.astype(cd), v_l.astype(cd))) * inv            # (N2, dh) f32

    # Per-head out-projection accumulates into the f32 accumulator:
    #   concat_h(o_h) @ W_out == sum_h o_h @ W_out[h*dh:(h+1)*dh, :]
    acc_s[...] += dot(o.astype(cd), wo_h)                      # (N2, D)

    @pl.when(h == pl.num_programs(1) - 1)
    def _finalize():
        out_ref[...] = acc_s[...].astype(out_ref.dtype)


def perceiver_attention(x, latents, params, *, heads, dim_head,
                        compute_dtype=jnp.bfloat16):
    B, N1, D = x.shape
    _, N2, _ = latents.shape
    inner = heads * dim_head

    # ---------------- host-side weight preparation (free) ----------------------
    scale = float(dim_head) ** (-0.25)          # applied to q AND k in the reference
    wq = params["wq"]                           # (D, inner)
    wk = params["wkv"][:, :inner]               # (D, inner)
    wv = params["wkv"][:, inner:]               # (D, inner)
    wo = params["wo"]                           # (inner, D)

    def split_heads_in(w):                      # (D, inner) -> (heads, D, dh)
        return jnp.transpose(w.reshape(D, heads, dim_head), (1, 0, 2))

    wq3 = split_heads_in(wq * scale).astype(compute_dtype)
    wk3 = split_heads_in(wk * scale).astype(compute_dtype)
    wv3 = split_heads_in(wv).astype(compute_dtype)
    wo3 = wo.reshape(heads, dim_head, D).astype(compute_dtype)

    g1 = params["g1"].reshape(1, D)
    b1 = params["b1"].reshape(1, D)
    g2 = params["g2"].reshape(1, D)
    b2 = params["b2"].reshape(1, D)

    # ---------------- explicit VMEM budget (v5e default too small, v7x = 64MiB) -
    cbytes = jnp.dtype(compute_dtype).itemsize
    abytes = jnp.dtype(x.dtype).itemsize
    weight_bytes = 4 * D * inner * cbytes + 4 * D * 4
    act_bytes = (N1 + 2 * N2) * D * abytes
    scratch_bytes = (N1 + N2) * D * cbytes + N2 * D * 4
    vmem_limit = int(min(64 << 20,
                         max(32 << 20,
                             2 * (weight_bytes + act_bytes) + scratch_bytes + (8 << 20))))

    kernel = functools.partial(_perceiver_attention_kernel,
                               compute_dtype=compute_dtype)

    return pl.pallas_call(
        kernel,
        out_shape=jax.ShapeDtypeStruct((B, N2, D), x.dtype),
        grid=(B, heads),
        in_specs=[
            pl.BlockSpec((None, N1, D), lambda b, h: (b, 0, 0)),          # x
            pl.BlockSpec((None, N2, D), lambda b, h: (b, 0, 0)),          # latents
            pl.BlockSpec((1, D), lambda b, h: (0, 0)),                    # norm1 gamma
            pl.BlockSpec((1, D), lambda b, h: (0, 0)),                    # norm1 beta
            pl.BlockSpec((1, D), lambda b, h: (0, 0)),                    # norm2 gamma
            pl.BlockSpec((1, D), lambda b, h: (0, 0)),                    # norm2 beta
            pl.BlockSpec((heads, D, dim_head), lambda b, h: (0, 0, 0)),   # W_q  per head
            pl.BlockSpec((heads, D, dim_head), lambda b, h: (0, 0, 0)),   # W_k  per head
            pl.BlockSpec((heads, D, dim_head), lambda b, h: (0, 0, 0)),   # W_v  per head
            pl.BlockSpec((heads, dim_head, D), lambda b, h: (0, 0, 0)),   # W_out per head
        ],
        out_specs=pl.BlockSpec((None, N2, D), lambda b, h: (b, 0, 0)),
        scratch_shapes=[
            pltpu.VMEM((N1, D), compute_dtype),    # normalized x (per batch element)
            pltpu.VMEM((N2, D), compute_dtype),    # normalized latents
            pltpu.VMEM((N2, D), jnp.float32),      # output accumulator over heads
        ],
        compiler_params=pltpu.CompilerParams(
            dimension_semantics=("parallel", "arbitrary"),
            vmem_limit_bytes=vmem_limit),
    )(x, latents, g1, b1, g2, b2, wq3, wk3, wv3, wo3)


def reference_forward(x, latents, params, heads, dim_head):
    """Pure-JAX (f32) replica of the PyTorch forward for verification."""
    eps = 1e-5
    inner = heads * dim_head

    def layernorm(t, g, b):
        mu = jnp.mean(t, axis=-1, keepdims=True)
        var = jnp.mean((t - mu) ** 2, axis=-1, keepdims=True)
        return (t - mu) / jnp.sqrt(var + eps) * g + b

    xn = layernorm(x, params["g1"], params["b1"])
    ln = layernorm(latents, params["g2"], params["b2"])
    b, l, _ = latents.shape
    q = ln @ params["wq"]
    kv_in = jnp.concatenate([xn, ln], axis=-2)
    kv = kv_in @ params["wkv"]
    k, v = kv[..., :inner], kv[..., inner:]

    def resh(t):
        bs, length, _ = t.shape
        return t.reshape(bs, length, heads, -1).transpose(0, 2, 1, 3)

    q, k, v = resh(q), resh(k), resh(v)
    scale = 1.0 / np.sqrt(np.sqrt(dim_head))
    w = (q * scale) @ jnp.swapaxes(k * scale, -2, -1)
    w = jax.nn.softmax(w.astype(jnp.float32), axis=-1).astype(w.dtype)
    out = w @ v
    out = out.transpose(0, 2, 1, 3).reshape(b, l, -1)
    return out @ params["wo"]


if __name__ == "__main__":
    # Small but lane/sublane-aligned shapes (D and inner multiples of 128, seq % 8 == 0).
    B, N1, N2, D = 2, 16, 8, 128
    heads, dim_head = 2, 64
    inner = heads * dim_head

    key = jax.random.PRNGKey(0)
    ks = jax.random.split(key, 5)
    x = jax.random.normal(ks[0], (B, N1, D), jnp.float32)
    latents = jax.random.normal(ks[1], (B, N2, D), jnp.float32)

    params = {
        # LayerNorm params: PyTorch default init (weight=1, bias=0)
        "g1": jnp.ones((1, D), jnp.float32),
        "b1": jnp.zeros((1, D), jnp.float32),
        "g2": jnp.ones((1, D), jnp.float32),
        "b2": jnp.zeros((1, D), jnp.float32),
        # Linear weights (bias=False), stored as (in, out)
        "wq": jax.random.normal(ks[2], (D, inner), jnp.float32) * 0.05,
        "wkv": jax.random.normal(ks[3], (D, 2 * inner), jnp.float32) * 0.05,
        "wo": jax.random.normal(ks[4], (inner, D), jnp.float32) * 0.05,
    }

    ref = reference_forward(x, latents, params, heads, dim_head)

    # f32 compute path: tight check (tolerance covers the approx reciprocal).
    out_f32 = jax.block_until_ready(
        perceiver_attention(x, latents, params, heads=heads, dim_head=dim_head,
                            compute_dtype=jnp.float32))
    assert out_f32.shape == (B, N2, D)
    assert np.allclose(np.asarray(out_f32), np.asarray(ref), atol=2e-3, rtol=2e-3), \
        "Pallas (f32 compute) output mismatch vs pure-JAX reference"

    # Default bf16 MXU fast path: looser tolerance vs the f32 reference.
    out_bf16 = jax.block_until_ready(
        perceiver_attention(x, latents, params, heads=heads, dim_head=dim_head))
    assert out_bf16.shape == (B, N2, D)
    assert np.allclose(np.asarray(out_bf16), np.asarray(ref), atol=3e-2, rtol=3e-2), \
        "Pallas (bf16 compute) output mismatch vs pure-JAX reference"

    print("KERNEL_OK")
</pallas_src>

<mosaic_0001>
module attributes {stable_mosaic.version = 11 : i64} {
  func.func @_perceiver_attention_kernel(%arg0: i32, %arg1: i32, %arg2: memref<1x16x128xf32, #tpu.memory_space<vmem>>, %arg3: memref<1x8x128xf32, #tpu.memory_space<vmem>>, %arg4: memref<1x128xf32, #tpu.memory_space<vmem>>, %arg5: memref<1x128xf32, #tpu.memory_space<vmem>>, %arg6: memref<1x128xf32, #tpu.memory_space<vmem>>, %arg7: memref<1x128xf32, #tpu.memory_space<vmem>>, %arg8: memref<2x128x64xf32, #tpu.memory_space<vmem>>, %arg9: memref<2x128x64xf32, #tpu.memory_space<vmem>>, %arg10: memref<2x128x64xf32, #tpu.memory_space<vmem>>, %arg11: memref<2x64x128xf32, #tpu.memory_space<vmem>>, %arg12: memref<1x8x128xf32, #tpu.memory_space<vmem>>, %arg13: memref<16x128xf32, #tpu.memory_space<vmem>>, %arg14: memref<8x128xf32, #tpu.memory_space<vmem>>, %arg15: memref<8x128xf32, #tpu.memory_space<vmem>>) attributes {dimension_semantics = [#tpu.dimension_semantics<parallel>, #tpu.dimension_semantics<arbitrary>], iteration_bounds = array<i64: 2, 2>, scalar_prefetch = 0 : i64, scratch_operands = 3 : i64, tpu.core_type = #tpu.core_type<tc>, window_params = [{transform_indices = @transform_0, window_bounds = array<i64: 1, 16, 128>}, {transform_indices = @transform_1, window_bounds = array<i64: 1, 8, 128>}, {pipeline_mode = #tpu.pipeline_mode<synchronous>, transform_indices = @transform_2, window_bounds = array<i64: 1, 128>}, {pipeline_mode = #tpu.pipeline_mode<synchronous>, transform_indices = @transform_3, window_bounds = array<i64: 1, 128>}, {pipeline_mode = #tpu.pipeline_mode<synchronous>, transform_indices = @transform_4, window_bounds = array<i64: 1, 128>}, {pipeline_mode = #tpu.pipeline_mode<synchronous>, transform_indices = @transform_5, window_bounds = array<i64: 1, 128>}, {pipeline_mode = #tpu.pipeline_mode<synchronous>, transform_indices = @transform_6, window_bounds = array<i64: 2, 128, 64>}, {pipeline_mode = #tpu.pipeline_mode<synchronous>, transform_indices = @transform_7, window_bounds = array<i64: 2, 128, 64>}, {pipeline_mode = #tpu.pipeline_mode<synchronous>, transform_indices = @transform_8, window_bounds = array<i64: 2, 128, 64>}, {pipeline_mode = #tpu.pipeline_mode<synchronous>, transform_indices = @transform_9, window_bounds = array<i64: 2, 64, 128>}, {transform_indices = @transform_10, window_bounds = array<i64: 1, 8, 128>}]} {
    %c0_i32 = arith.constant 0 : i32
    %0 = arith.cmpi eq, %arg1, %c0_i32 : i32
    %1 = arith.extui %0 : i1 to i32
    %c0_i32_0 = arith.constant 0 : i32
    %2 = arith.cmpi ne, %1, %c0_i32_0 : i32
    scf.if %2 {
      %c0_30 = arith.constant 0 : index
      %c0_31 = arith.constant 0 : index
      %c0_32 = arith.constant 0 : index
      %53 = vector.load %arg2[%c0_30, %c0_31, %c0_32] : memref<1x16x128xf32, #tpu.memory_space<vmem>>, vector<1x16x128xf32>
      %54 = vector.shape_cast %53 : vector<1x16x128xf32> to vector<16x128xf32>
      %c0_33 = arith.constant 0 : index
      %c0_34 = arith.constant 0 : index
      %55 = vector.load %arg4[%c0_33, %c0_34] : memref<1x128xf32, #tpu.memory_space<vmem>>, vector<1x128xf32>
      %c0_35 = arith.constant 0 : index
      %c0_36 = arith.constant 0 : index
      %56 = vector.load %arg5[%c0_35, %c0_36] : memref<1x128xf32, #tpu.memory_space<vmem>>, vector<1x128xf32>
      %cst_37 = arith.constant dense<0.000000e+00> : vector<16xf32>
      %57 = vector.multi_reduction <add>, %54, %cst_37 [1] : vector<16x128xf32> to vector<16xf32>
      %58 = vector.shape_cast %57 : vector<16xf32> to vector<16x1xf32>
      %cst_38 = arith.constant 1.280000e+02 : f32
      %59 = vector.broadcast %cst_38 : f32 to vector<16x1xf32>
      %60 = arith.divf %58, %59 : vector<16x1xf32>
      %61 = vector.broadcast %60 : vector<16x1xf32> to vector<16x128xf32>
      %62 = arith.subf %54, %61 : vector<16x128xf32>
      %63 = arith.mulf %62, %62 : vector<16x128xf32>
      %cst_39 = arith.constant dense<0.000000e+00> : vector<16xf32>
      %64 = vector.multi_reduction <add>, %63, %cst_39 [1] : vector<16x128xf32> to vector<16xf32>
      %65 = vector.shape_cast %64 : vector<16xf32> to vector<16x1xf32>
      %cst_40 = arith.constant 1.280000e+02 : f32
      %66 = vector.broadcast %cst_40 : f32 to vector<16x1xf32>
      %67 = arith.divf %65, %66 : vector<16x1xf32>
      %68 = vector.broadcast %60 : vector<16x1xf32> to vector<16x128xf32>
      %69 = arith.subf %54, %68 : vector<16x128xf32>
      %cst_41 = arith.constant 9.99999974E-6 : f32
      %70 = vector.broadcast %cst_41 : f32 to vector<16x1xf32>
      %71 = arith.addf %67, %70 : vector<16x1xf32>
      %72 = math.rsqrt %71 : vector<16x1xf32>
      %73 = vector.broadcast %72 : vector<16x1xf32> to vector<16x128xf32>
      %74 = arith.mulf %69, %73 : vector<16x128xf32>
      %75 = vector.broadcast %55 : vector<1x128xf32> to vector<16x128xf32>
      %76 = arith.mulf %74, %75 : vector<16x128xf32>
      %77 = vector.broadcast %56 : vector<1x128xf32> to vector<16x128xf32>
      %78 = arith.addf %76, %77 : vector<16x128xf32>
      %c0_42 = arith.constant 0 : index
      %c0_43 = arith.constant 0 : index
      %79 = vector.load %arg13[%c0_42, %c0_43] : memref<16x128xf32, #tpu.memory_space<vmem>>, vector<16x128xf32>
      tpu.vector_store %arg13[%c0_42, %c0_43], %78 {strides = array<i32>} : memref<16x128xf32, #tpu.memory_space<vmem>>, vector<16x128xf32>,
      %c0_44 = arith.constant 0 : index
      %c0_45 = arith.constant 0 : index
      %c0_46 = arith.constant 0 : index
      %80 = vector.load %arg3[%c0_44, %c0_45, %c0_46] : memref<1x8x128xf32, #tpu.memory_space<vmem>>, vector<1x8x128xf32>
      %81 = vector.shape_cast %80 : vector<1x8x128xf32> to vector<8x128xf32>
      %c0_47 = arith.constant 0 : index
      %c0_48 = arith.constant 0 : index
      %82 = vector.load %arg6[%c0_47, %c0_48] : memref<1x128xf32, #tpu.memory_space<vmem>>, vector<1x128xf32>
      %c0_49 = arith.constant 0 : index
      %c0_50 = arith.constant 0 : index
      %83 = vector.load %arg7[%c0_49, %c0_50] : memref<1x128xf32, #tpu.memory_space<vmem>>, vector<1x128xf32>
      %cst_51 = arith.constant dense<0.000000e+00> : vector<8xf32>
      %84 = vector.multi_reduction <add>, %81, %cst_51 [1] : vector<8x128xf32> to vector<8xf32>
      %85 = vector.shape_cast %84 : vector<8xf32> to vector<8x1xf32>
      %cst_52 = arith.constant 1.280000e+02 : f32
      %86 = vector.broadcast %cst_52 : f32 to vector<8x1xf32>
      %87 = arith.divf %85, %86 : vector<8x1xf32>
      %88 = vector.broadcast %87 : vector<8x1xf32> to vector<8x128xf32>
      %89 = arith.subf %81, %88 : vector<8x128xf32>
      %90 = arith.mulf %89, %89 : vector<8x128xf32>
      %cst_53 = arith.constant dense<0.000000e+00> : vector<8xf32>
      %91 = vector.multi_reduction <add>, %90, %cst_53 [1] : vector<8x128xf32> to vector<8xf32>
      %92 = vector.shape_cast %91 : vector<8xf32> to vector<8x1xf32>
      %cst_54 = arith.constant 1.280000e+02 : f32
      %93 = vector.broadcast %cst_54 : f32 to vector<8x1xf32>
      %94 = arith.divf %92, %93 : vector<8x1xf32>
      %95 = vector.broadcast %87 : vector<8x1xf32> to vector<8x128xf32>
      %96 = arith.subf %81, %95 : vector<8x128xf32>
      %cst_55 = arith.constant 9.99999974E-6 : f32
      %97 = vector.broadcast %cst_55 : f32 to vector<8x1xf32>
      %98 = arith.addf %94, %97 : vector<8x1xf32>
      %99 = math.rsqrt %98 : vector<8x1xf32>
      %100 = vector.broadcast %99 : vector<8x1xf32> to vector<8x128xf32>
      %101 = arith.mulf %96, %100 : vector<8x128xf32>
      %102 = vector.broadcast %82 : vector<1x128xf32> to vector<8x128xf32>
      %103 = arith.mulf %101, %102 : vector<8x128xf32>
      %104 = vector.broadcast %83 : vector<1x128xf32> to vector<8x128xf32>
      %105 = arith.addf %103, %104 : vector<8x128xf32>
      %c0_56 = arith.constant 0 : index
      %c0_57 = arith.constant 0 : index
      %106 = vector.load %arg14[%c0_56, %c0_57] : memref<8x128xf32, #tpu.memory_space<vmem>>, vector<8x128xf32>
      tpu.vector_store %arg14[%c0_56, %c0_57], %105 {strides = array<i32>} : memref<8x128xf32, #tpu.memory_space<vmem>>, vector<8x128xf32>,
      %cst_58 = arith.constant 0.000000e+00 : f32
      %107 = vector.broadcast %cst_58 : f32 to vector<8x128xf32>
      %c0_59 = arith.constant 0 : index
      %c0_60 = arith.constant 0 : index
      %108 = vector.load %arg15[%c0_59, %c0_60] : memref<8x128xf32, #tpu.memory_space<vmem>>, vector<8x128xf32>
      tpu.vector_store %arg15[%c0_59, %c0_60], %107 {strides = array<i32>} : memref<8x128xf32, #tpu.memory_space<vmem>>, vector<8x128xf32>,
    } else {
    }
    %3 = arith.index_cast %arg1 : i32 to index
    %c0 = arith.constant 0 : index
    %c0_1 = arith.constant 0 : index
    %4 = vector.load %arg8[%3, %c0, %c0_1] : memref<2x128x64xf32, #tpu.memory_space<vmem>>, vector<1x128x64xf32>
    %5 = vector.shape_cast %4 : vector<1x128x64xf32> to vector<128x64xf32>
    %6 = arith.index_cast %arg1 : i32 to index
    %c0_2 = arith.constant 0 : index
    %c0_3 = arith.constant 0 : index
    %7 = vector.load %arg9[%6, %c0_2, %c0_3] : memref<2x128x64xf32, #tpu.memory_space<vmem>>, vector<1x128x64xf32>
    %8 = vector.shape_cast %7 : vector<1x128x64xf32> to vector<128x64xf32>
    %9 = arith.index_cast %arg1 : i32 to index
    %c0_4 = arith.constant 0 : index
    %c0_5 = arith.constant 0 : index
    %10 = vector.load %arg10[%9, %c0_4, %c0_5] : memref<2x128x64xf32, #tpu.memory_space<vmem>>, vector<1x128x64xf32>
    %11 = vector.shape_cast %10 : vector<1x128x64xf32> to vector<128x64xf32>
    %12 = arith.index_cast %arg1 : i32 to index
    %c0_6 = arith.constant 0 : index
    %c0_7 = arith.constant 0 : index
    %13 = vector.load %arg11[%12, %c0_6, %c0_7] : memref<2x64x128xf32, #tpu.memory_space<vmem>>, vector<1x64x128xf32>
    %14 = vector.shape_cast %13 : vector<1x64x128xf32> to vector<64x128xf32>
    %c0_8 = arith.constant 0 : index
    %c0_9 = arith.constant 0 : index
    %15 = vector.load %arg13[%c0_8, %c0_9] : memref<16x128xf32, #tpu.memory_space<vmem>>, vector<16x128xf32>
    %c0_10 = arith.constant 0 : index
    %c0_11 = arith.constant 0 : index
    %16 = vector.load %arg14[%c0_10, %c0_11] : memref<8x128xf32, #tpu.memory_space<vmem>>, vector<8x128xf32>
    %cst = arith.constant dense<0.000000e+00> : vector<8x64xf32>
    %17 = tpu.matmul %16, %5, %cst {dimension_numbers = #tpu.dot_dimension_numbers<[1], [0], [0], [1], [0, 0, 1, 1], [], []>} : vector<8x128xf32>, vector<128x64xf32>, vector<8x64xf32> -> vector<8x64xf32>
    %cst_12 = arith.constant dense<0.000000e+00> : vector<16x64xf32>
    %18 = tpu.matmul %15, %8, %cst_12 {dimension_numbers = #tpu.dot_dimension_numbers<[1], [0], [0], [1], [0, 0, 1, 1], [], []>} : vector<16x128xf32>, vector<128x64xf32>, vector<16x64xf32> -> vector<16x64xf32>
    %cst_13 = arith.constant dense<0.000000e+00> : vector<8x64xf32>
    %19 = tpu.matmul %16, %8, %cst_13 {dimension_numbers = #tpu.dot_dimension_numbers<[1], [0], [0], [1], [0, 0, 1, 1], [], []>} : vector<8x128xf32>, vector<128x64xf32>, vector<8x64xf32> -> vector<8x64xf32>
    %cst_14 = arith.constant dense<0.000000e+00> : vector<16x64xf32>
    %20 = tpu.matmul %15, %11, %cst_14 {dimension_numbers = #tpu.dot_dimension_numbers<[1], [0], [0], [1], [0, 0, 1, 1], [], []>} : vector<16x128xf32>, vector<128x64xf32>, vector<16x64xf32> -> vector<16x64xf32>
    %cst_15 = arith.constant dense<0.000000e+00> : vector<8x64xf32>
    %21 = tpu.matmul %16, %11, %cst_15 {dimension_numbers = #tpu.dot_dimension_numbers<[1], [0], [0], [1], [0, 0, 1, 1], [], []>} : vector<8x128xf32>, vector<128x64xf32>, vector<8x64xf32> -> vector<8x64xf32>
    %cst_16 = arith.constant dense<0.000000e+00> : vector<8x16xf32>
    %22 = tpu.matmul %17, %18, %cst_16 {dimension_numbers = #tpu.dot_dimension_numbers<[1], [1], [0], [0], [0, 0, 1, 0], [], []>} : vector<8x64xf32>, vector<16x64xf32>, vector<8x16xf32> -> vector<8x16xf32>
    %cst_17 = arith.constant dense<0.000000e+00> : vector<8x8xf32>
    %23 = tpu.matmul %17, %19, %cst_17 {dimension_numbers = #tpu.dot_dimension_numbers<[1], [1], [0], [0], [0, 0, 1, 0], [], []>} : vector<8x64xf32>, vector<8x64xf32>, vector<8x8xf32> -> vector<8x8xf32>
    %cst_18 = arith.constant dense<0xFF800000> : vector<8xf32>
    %24 = vector.multi_reduction <maximumf>, %22, %cst_18 [1] : vector<8x16xf32> to vector<8xf32>
    %25 = vector.shape_cast %24 : vector<8xf32> to vector<8x1xf32>
    %cst_19 = arith.constant dense<0xFF800000> : vector<8xf32>
    %26 = vector.multi_reduction <maximumf>, %23, %cst_19 [1] : vector<8x8xf32> to vector<8xf32>
    %27 = vector.shape_cast %26 : vector<8xf32> to vector<8x1xf32>
    %28 = arith.maximumf %25, %27 : vector<8x1xf32>
    %29 = vector.broadcast %28 : vector<8x1xf32> to vector<8x16xf32>
    %30 = arith.subf %22, %29 : vector<8x16xf32>
    %31 = math.exp %30 : vector<8x16xf32>
    %32 = vector.broadcast %28 : vector<8x1xf32> to vector<8x8xf32>
    %33 = arith.subf %23, %32 : vector<8x8xf32>
    %34 = math.exp %33 : vector<8x8xf32>
    %cst_20 = arith.constant dense<0.000000e+00> : vector<8xf32>
    %35 = vector.multi_reduction <add>, %31, %cst_20 [1] : vector<8x16xf32> to vector<8xf32>
    %36 = vector.shape_cast %35 : vector<8xf32> to vector<8x1xf32>
    %cst_21 = arith.constant dense<0.000000e+00> : vector<8xf32>
    %37 = vector.multi_reduction <add>, %34, %cst_21 [1] : vector<8x8xf32> to vector<8xf32>
    %38 = vector.shape_cast %37 : vector<8xf32> to vector<8x1xf32>
    %39 = arith.addf %36, %38 : vector<8x1xf32>
    %40 = tpu.reciprocal %39 {approx = true} : vector<8x1xf32> -> vector<8x1xf32>
    %cst_22 = arith.constant dense<0.000000e+00> : vector<8x64xf32>
    %41 = tpu.matmul %31, %20, %cst_22 {dimension_numbers = #tpu.dot_dimension_numbers<[1], [0], [0], [1], [0, 0, 1, 1], [], []>} : vector<8x16xf32>, vector<16x64xf32>, vector<8x64xf32> -> vector<8x64xf32>
    %cst_23 = arith.constant dense<0.000000e+00> : vector<8x64xf32>
    %42 = tpu.matmul %34, %21, %cst_23 {dimension_numbers = #tpu.dot_dimension_numbers<[1], [0], [0], [1], [0, 0, 1, 1], [], []>} : vector<8x8xf32>, vector<8x64xf32>, vector<8x64xf32> -> vector<8x64xf32>
    %43 = arith.addf %41, %42 : vector<8x64xf32>
    %44 = vector.broadcast %40 : vector<8x1xf32> to vector<8x64xf32>
    %45 = arith.mulf %43, %44 : vector<8x64xf32>
    %c0_24 = arith.constant 0 : index
    %c0_25 = arith.constant 0 : index
    %46 = vector.load %arg15[%c0_24, %c0_25] : memref<8x128xf32, #tpu.memory_space<vmem>>, vector<8x128xf32>
    %cst_26 = arith.constant dense<0.000000e+00> : vector<8x128xf32>
    %47 = tpu.matmul %45, %14, %cst_26 {dimension_numbers = #tpu.dot_dimension_numbers<[1], [0], [0], [1], [0, 0, 1, 1], [], []>} : vector<8x64xf32>, vector<64x128xf32>, vector<8x128xf32> -> vector<8x128xf32>
    %48 = arith.addf %46, %47 : vector<8x128xf32>
    %c0_27 = arith.constant 0 : index
    %c0_28 = arith.constant 0 : index
    %49 = vector.load %arg15[%c0_27, %c0_28] : memref<8x128xf32, #tpu.memory_space<vmem>>, vector<8x128xf32>
    tpu.vector_store %arg15[%c0_27, %c0_28], %48 {strides = array<i32>} : memref<8x128xf32, #tpu.memory_space<vmem>>, vector<8x128xf32>,
    %c1_i32 = arith.constant 1 : i32
    %50 = arith.cmpi eq, %arg1, %c1_i32 : i32
    %51 = arith.extui %50 : i1 to i32
    %c0_i32_29 = arith.constant 0 : i32
    %52 = arith.cmpi ne, %51, %c0_i32_29 : i32
    scf.if %52 {
      %c0_30 = arith.constant 0 : index
      %c0_31 = arith.constant 0 : index
      %53 = vector.load %arg15[%c0_30, %c0_31] : memref<8x128xf32, #tpu.memory_space<vmem>>, vector<8x128xf32>
      %c0_32 = arith.constant 0 : index
      %c0_33 = arith.constant 0 : index
      %c0_34 = arith.constant 0 : index
      %54 = vector.load %arg12[%c0_32, %c0_33, %c0_34] : memref<1x8x128xf32, #tpu.memory_space<vmem>>, vector<1x8x128xf32>
      %55 = vector.shape_cast %54 : vector<1x8x128xf32> to vector<8x128xf32>
      %56 = vector.shape_cast %53 : vector<8x128xf32> to vector<1x8x128xf32>
      tpu.vector_store %arg12[%c0_32, %c0_33, %c0_34], %56 {strides = array<i32>} : memref<1x8x128xf32, #tpu.memory_space<vmem>>, vector<1x8x128xf32>,
    } else {
    }
    return
  }
  func.func @transform_0(%arg0: i32, %arg1: i32) -> (i32, i32, i32) {
    %c0_i32 = arith.constant 0 : i32
    %c0_i32_0 = arith.constant 0 : i32
    %c0_i32_1 = arith.constant 0 : i32
    return %arg0, %c0_i32, %c0_i32_0 : i32, i32, i32
  }
  func.func @transform_1(%arg0: i32, %arg1: i32) -> (i32, i32, i32) {
    %c0_i32 = arith.constant 0 : i32
    %c0_i32_0 = arith.constant 0 : i32
    %c0_i32_1 = arith.constant 0 : i32
    return %arg0, %c0_i32, %c0_i32_0 : i32, i32, i32
  }
  func.func @transform_2(%arg0: i32, %arg1: i32) -> (i32, i32) {
    %c0_i32 = arith.constant 0 : i32
    %c0_i32_0 = arith.constant 0 : i32
    %c0_i32_1 = arith.constant 0 : i32
    return %c0_i32, %c0_i32_0 : i32, i32
  }
  func.func @transform_3(%arg0: i32, %arg1: i32) -> (i32, i32) {
    %c0_i32 = arith.constant 0 : i32
    %c0_i32_0 = arith.constant 0 : i32
    %c0_i32_1 = arith.constant 0 : i32
    return %c0_i32, %c0_i32_0 : i32, i32
  }
  func.func @transform_4(%arg0: i32, %arg1: i32) -> (i32, i32) {
    %c0_i32 = arith.constant 0 : i32
    %c0_i32_0 = arith.constant 0 : i32
    %c0_i32_1 = arith.constant 0 : i32
    return %c0_i32, %c0_i32_0 : i32, i32
  }
  func.func @transform_5(%arg0: i32, %arg1: i32) -> (i32, i32) {
    %c0_i32 = arith.constant 0 : i32
    %c0_i32_0 = arith.constant 0 : i32
    %c0_i32_1 = arith.constant 0 : i32
    return %c0_i32, %c0_i32_0 : i32, i32
  }
  func.func @transform_6(%arg0: i32, %arg1: i32) -> (i32, i32, i32) {
    %c0_i32 = arith.constant 0 : i32
    %c0_i32_0 = arith.constant 0 : i32
    %c0_i32_1 = arith.constant 0 : i32
    %c0_i32_2 = arith.constant 0 : i32
    return %c0_i32, %c0_i32_0, %c0_i32_1 : i32, i32, i32
  }
  func.func @transform_7(%arg0: i32, %arg1: i32) -> (i32, i32, i32) {
    %c0_i32 = arith.constant 0 : i32
    %c0_i32_0 = arith.constant 0 : i32
    %c0_i32_1 = arith.constant 0 : i32
    %c0_i32_2 = arith.constant 0 : i32
    return %c0_i32, %c0_i32_0, %c0_i32_1 : i32, i32, i32
  }
  func.func @transform_8(%arg0: i32, %arg1: i32) -> (i32, i32, i32) {
    %c0_i32 = arith.constant 0 : i32
    %c0_i32_0 = arith.constant 0 : i32
    %c0_i32_1 = arith.constant 0 : i32
    %c0_i32_2 = arith.constant 0 : i32
    return %c0_i32, %c0_i32_0, %c0_i32_1 : i32, i32, i32
  }
  func.func @transform_9(%arg0: i32, %arg1: i32) -> (i32, i32, i32) {
    %c0_i32 = arith.constant 0 : i32
    %c0_i32_0 = arith.constant 0 : i32
    %c0_i32_1 = arith.constant 0 : i32
    %c0_i32_2 = arith.constant 0 : i32
    return %c0_i32, %c0_i32_0, %c0_i32_1 : i32, i32, i32
  }
  func.func @transform_10(%arg0: i32, %arg1: i32) -> (i32, i32, i32) {
    %c0_i32 = arith.constant 0 : i32
    %c0_i32_0 = arith.constant 0 : i32
    %c0_i32_1 = arith.constant 0 : i32
    return %arg0, %c0_i32, %c0_i32_0 : i32, i32, i32
  }
}

</mosaic_0001>

<llo_original>
// kernel: tpu_custom_call.1
$region0: #{tpu_custom_call.1}
  #allocation0 [shape = 'u32[]', space=smem, size = 0x4, offset = 0x4, fixed_abs, tag = 'smem constant byte address 0x4 - core index']
  #allocation1 [shape = 'u32[144,128]{1,0:T(1,128)}', space=vmem, size = 0x12000, scoped, tag = 'internal scratch']
  #allocation2 [shape = 'f32[16,128]{1,0:T(8,128)}', space=vmem, size = 0x2000, scoped, tag = 'scratch operand']
  #allocation3 [shape = 'f32[8,128]{1,0:T(8,128)}', space=vmem, size = 0x1000, scoped, tag = 'scratch operand']
  #allocation4 [shape = 'f32[8,128]{1,0:T(8,128)}', space=vmem, size = 0x1000, scoped, tag = 'scratch operand']
  %s0 = inlined_call_operand.vmem [shape: f32[2,16,128], index: 0, kind: input, shape index: {}]
  %s1 = inlined_call_operand.vmem [shape: f32[2,8,128], index: 1, kind: input, shape index: {}]
  %s2 = inlined_call_operand.vmem [shape: f32[1,128], index: 2, kind: input, shape index: {}]
  %s3 = inlined_call_operand.vmem [shape: f32[1,128], index: 3, kind: input, shape index: {}]
  %s4 = inlined_call_operand.vmem [shape: f32[1,128], index: 4, kind: input, shape index: {}]
  %s5 = inlined_call_operand.vmem [shape: f32[1,128], index: 5, kind: input, shape index: {}]
  %s6 = inlined_call_operand.vmem [shape: f32[2,128,64], index: 6, kind: input, shape index: {}]
  %s7 = inlined_call_operand.vmem [shape: f32[2,128,64], index: 7, kind: input, shape index: {}]
  %s8 = inlined_call_operand.vmem [shape: f32[2,128,64], index: 8, kind: input, shape index: {}]
  %s9 = inlined_call_operand.vmem [shape: f32[2,64,128], index: 9, kind: input, shape index: {}]
  %s10 = inlined_call_operand.hbm [shape: f32[2,8,128], index: 10, kind: output, shape index: {}]
  %s11 = sld [smem:[#allocation0]]
  $region81: #{tpu_custom_call.1} parent=0
    _
  %s13 = ssub.s32 1, %s11
  %s14 = scalar_select 0, %s13, %s11
  $region1: #{tpu_custom_call.1} parent=0
    #allocation5 [shape = 'u8[8192]{0}', space=vmem, size = 0x2000, scoped, tag = 'output window, operand 0']
    #allocation6 [shape = 's32[2]{0}', space=sflag, size = 0x8, scoped, tag = 'scoped memory for tpu_custom_call.1']
    %15 = vsyncpa [#allocation6], 0
    %s16 = scalar_lea.sflag [#allocation6], 1
    %17 = vsyncpa %s16, 0
    loop: start=0, step=1, limit=6
    $region2: #{tpu_custom_call.1} parent=1 // loop_pre_header
      _
    $region3: #{tpu_custom_call.1} parent=1 // loop_header
      %s19 = sphi 0, %s23
      %p20 = scmp.ge.s32.totalorder %s19, 6
      %s26 = sphi 0, %s38
      %s27 = sphi 0, %s34
      %s28 = sphi 0, %s26
      %s29 = sphi 0, %s27
      %s30 = sphi 0, %s28
      %s31 = sphi 0, %s29
      %s41 = sphi 0, %s43
      %s44 = sphi 0, %s41
      %s45 = sphi 0, %s44
      %s61 = sphi 0, %s45
      %s67 = sphi 0, %s69
      %s70 = sphi 0, %s67
      %s71 = sphi 0, %s70
      %s87 = sphi 0, %s71
      %s91 = sphi 0, %s91
      %s93 = sphi 0, %s91
      %s94 = sphi 0, %s93
      %s108 = sphi 0, %s94
      %s112 = sphi 0, %s112
      %s114 = sphi 0, %s112
      %s115 = sphi 0, %s114
      %s129 = sphi 0, %s115
      %s133 = sphi 0, %s133
      %s135 = sphi 0, %s133
      %s136 = sphi 0, %s135
      %s150 = sphi 0, %s136
      %s154 = sphi 0, %s154
      %s156 = sphi 0, %s154
      %s157 = sphi 0, %s156
      %s171 = sphi 0, %s157
      %s175 = sphi 0, %s175
      %s177 = sphi 0, %s175
      %s178 = sphi 0, %s177
      %s192 = sphi 0, %s178
      %s196 = sphi 0, %s196
      %s198 = sphi 0, %s196
      %s199 = sphi 0, %s198
      %s213 = sphi 0, %s199
      %s217 = sphi 0, %s217
      %s219 = sphi 0, %s217
      %s220 = sphi 0, %s219
      %s234 = sphi 0, %s220
      %s238 = sphi 0, %s238
      %s240 = sphi 0, %s238
      %s241 = sphi 0, %s240
      %s255 = sphi 0, %s241
      %s261 = sphi 0, %s263
      %s264 = sphi 0, %s261
      %s265 = sphi 0, %s264
      %s281 = sphi 0, %s265
    $region4: #{tpu_custom_call.1} parent=1 // loop_header_branch
      %22 = sbr.rel (%p20) target = $region8
    $region5: #{tpu_custom_call.1} parent=1 // loop_body
      %s24 = ssub.s32 %s19, 1
      %s25 = ssub.s32 %s19, 2
      %s32 = sadd.s32 1, %s27
      %p33 = scmp.ge.s32.totalorder %s32, 2
      %s34 = scalar_select %p33, 0, %s32
      %s35 = sadd.s32 1, %s26
      %s36 = scalar_select %p33, %s35, %s26
      %p37 = scmp.ge.s32.totalorder %s36, 2
      %s38 = scalar_select %p37, 0, %s36
      %s39 = ssub.s32 %s26, %s38
      %p40 = scmp.eq.s32.totalorder %s39, 0
      %s42 = sadd.s32 %s41, 1
      %s43 = scalar_select %p40, %s41, %s42
      %p46 = pneg %p40
      %p47 = scmp.eq.s32.totalorder %s19, 3
      %p48 = por %p46, %p47
      %p49 = scmp.ne.s32.totalorder %s41, %s44
      %p50 = scmp.eq.s32.totalorder %s19, 0
      %p51 = por %p49, %p50
      %p52 = scmp.ne.s32.totalorder %s41, %s44
      %p53 = scmp.eq.s32.totalorder %s24, 3
      %p54 = por %p52, %p53
      %p55 = scmp.ne.s32.totalorder %s44, %s45
      %p56 = scmp.eq.s32.totalorder %s24, 0
      %p57 = por %p55, %p56
      %p58 = scmp.ne.s32.totalorder %s44, %s45
      %p59 = scmp.eq.s32.totalorder %s25, 3
      %p60 = por %p58, %p59
      %p62 = scmp.ne.s32.totalorder %s45, %s61
      %p63 = scmp.eq.s32.totalorder %s25, 0
      %p64 = por %p62, %p63
      %s65 = ssub.s32 %s26, %s38
      %p66 = scmp.eq.s32.totalorder %s65, 0
      %s68 = sadd.s32 %s67, 1
      %s69 = scalar_select %p66, %s67, %s68
      %p72 = pneg %p66
      %p73 = scmp.eq.s32.totalorder %s19, 3
      %p74 = por %p72, %p73
      %p75 = scmp.ne.s32.totalorder %s67, %s70
      %p76 = scmp.eq.s32.totalorder %s19, 0
      %p77 = por %p75, %p76
      %p78 = scmp.ne.s32.totalorder %s67, %s70
      %p79 = scmp.eq.s32.totalorder %s24, 3
      %p80 = por %p78, %p79
      %p81 = scmp.ne.s32.totalorder %s70, %s71
      %p82 = scmp.eq.s32.totalorder %s24, 0
      %p83 = por %p81, %p82
      %p84 = scmp.ne.s32.totalorder %s70, %s71
      %p85 = scmp.eq.s32.totalorder %s25, 3
      %p86 = por %p84, %p85
      %p88 = scmp.ne.s32.totalorder %s71, %s87
      %p89 = scmp.eq.s32.totalorder %s25, 0
      %p90 = por %p88, %p89
      %s92 = sadd.s32 %s91, 1
      %p95 = scmp.eq.s32.totalorder %s19, 3
      %p96 = scmp.ne.s32.totalorder %s91, %s93
      %p97 = scmp.eq.s32.totalorder %s19, 0
      %p98 = por %p96, %p97
      %p99 = scmp.ne.s32.totalorder %s91, %s93
      %p100 = scmp.eq.s32.totalorder %s24, 3
      %p101 = por %p99, %p100
      %p102 = scmp.ne.s32.totalorder %s93, %s94
      %p103 = scmp.eq.s32.totalorder %s24, 0
      %p104 = por %p102, %p103
      %p105 = scmp.ne.s32.totalorder %s93, %s94
      %p106 = scmp.eq.s32.totalorder %s25, 3
      %p107 = por %p105, %p106
      %p109 = scmp.ne.s32.totalorder %s94, %s108
      %p110 = scmp.eq.s32.totalorder %s25, 0
      %p111 = por %p109, %p110
      %s113 = sadd.s32 %s112, 1
      %p116 = scmp.eq.s32.totalorder %s19, 3
      %p117 = scmp.ne.s32.totalorder %s112, %s114
      %p118 = scmp.eq.s32.totalorder %s19, 0
      %p119 = por %p117, %p118
      %p120 = scmp.ne.s32.totalorder %s112, %s114
      %p121 = scmp.eq.s32.totalorder %s24, 3
      %p122 = por %p120, %p121
      %p123 = scmp.ne.s32.totalorder %s114, %s115
      %p124 = scmp.eq.s32.totalorder %s24, 0
      %p125 = por %p123, %p124
      %p126 = scmp.ne.s32.totalorder %s114, %s115
      %p127 = scmp.eq.s32.totalorder %s25, 3
      %p128 = por %p126, %p127
      %p130 = scmp.ne.s32.totalorder %s115, %s129
      %p131 = scmp.eq.s32.totalorder %s25, 0
      %p132 = por %p130, %p131
      %s134 = sadd.s32 %s133, 1
      %p137 = scmp.eq.s32.totalorder %s19, 3
      %p138 = scmp.ne.s32.totalorder %s133, %s135
      %p139 = scmp.eq.s32.totalorder %s19, 0
      %p140 = por %p138, %p139
      %p141 = scmp.ne.s32.totalorder %s133, %s135
      %p142 = scmp.eq.s32.totalorder %s24, 3
      %p143 = por %p141, %p142
      %p144 = scmp.ne.s32.totalorder %s135, %s136
      %p145 = scmp.eq.s32.totalorder %s24, 0
      %p146 = por %p144, %p145
      %p147 = scmp.ne.s32.totalorder %s135, %s136
      %p148 = scmp.eq.s32.totalorder %s25, 3
      %p149 = por %p147, %p148
      %p151 = scmp.ne.s32.totalorder %s136, %s150
      %p152 = scmp.eq.s32.totalorder %s25, 0
      %p153 = por %p151, %p152
      %s155 = sadd.s32 %s154, 1
      %p158 = scmp.eq.s32.totalorder %s19, 3
      %p159 = scmp.ne.s32.totalorder %s154, %s156
      %p160 = scmp.eq.s32.totalorder %s19, 0
      %p161 = por %p159, %p160
      %p162 = scmp.ne.s32.totalorder %s154, %s156
      %p163 = scmp.eq.s32.totalorder %s24, 3
      %p164 = por %p162, %p163
      %p165 = scmp.ne.s32.totalorder %s156, %s157
      %p166 = scmp.eq.s32.totalorder %s24, 0
      %p167 = por %p165, %p166
      %p168 = scmp.ne.s32.totalorder %s156, %s157
      %p169 = scmp.eq.s32.totalorder %s25, 3
      %p170 = por %p168, %p169
      %p172 = scmp.ne.s32.totalorder %s157, %s171
      %p173 = scmp.eq.s32.totalorder %s25, 0
      %p174 = por %p172, %p173
      %s176 = sadd.s32 %s175, 1
      %p179 = scmp.eq.s32.totalorder %s19, 3
      %p180 = scmp.ne.s32.totalorder %s175, %s177
      %p181 = scmp.eq.s32.totalorder %s19, 0
      %p182 = por %p180, %p181
      %p183 = scmp.ne.s32.totalorder %s175, %s177
      %p184 = scmp.eq.s32.totalorder %s24, 3
      %p185 = por %p183, %p184
      %p186 = scmp.ne.s32.totalorder %s177, %s178
      %p187 = scmp.eq.s32.totalorder %s24, 0
      %p188 = por %p186, %p187
      %p189 = scmp.ne.s32.totalorder %s177, %s178
      %p190 = scmp.eq.s32.totalorder %s25, 3
      %p191 = por %p189, %p190
      %p193 = scmp.ne.s32.totalorder %s178, %s192
      %p194 = scmp.eq.s32.totalorder %s25, 0
      %p195 = por %p193, %p194
      %s197 = sadd.s32 %s196, 1
      %p200 = scmp.eq.s32.totalorder %s19, 3
      %p201 = scmp.ne.s32.totalorder %s196, %s198
      %p202 = scmp.eq.s32.totalorder %s19, 0
      %p203 = por %p201, %p202
      %p204 = scmp.ne.s32.totalorder %s196, %s198
      %p205 = scmp.eq.s32.totalorder %s24, 3
      %p206 = por %p204, %p205
      %p207 = scmp.ne.s32.totalorder %s198, %s199
      %p208 = scmp.eq.s32.totalorder %s24, 0
      %p209 = por %p207, %p208
      %p210 = scmp.ne.s32.totalorder %s198, %s199
      %p211 = scmp.eq.s32.totalorder %s25, 3
      %p212 = por %p210, %p211
      %p214 = scmp.ne.s32.totalorder %s199, %s213
      %p215 = scmp.eq.s32.totalorder %s25, 0
      %p216 = por %p214, %p215
      %s218 = sadd.s32 %s217, 1
      %p221 = scmp.eq.s32.totalorder %s19, 3
      %p222 = scmp.ne.s32.totalorder %s217, %s219
      %p223 = scmp.eq.s32.totalorder %s19, 0
      %p224 = por %p222, %p223
      %p225 = scmp.ne.s32.totalorder %s217, %s219
      %p226 = scmp.eq.s32.totalorder %s24, 3
      %p227 = por %p225, %p226
      %p228 = scmp.ne.s32.totalorder %s219, %s220
      %p229 = scmp.eq.s32.totalorder %s24, 0
      %p230 = por %p228, %p229
      %p231 = scmp.ne.s32.totalorder %s219, %s220
      %p232 = scmp.eq.s32.totalorder %s25, 3
      %p233 = por %p231, %p232
      %p235 = scmp.ne.s32.totalorder %s220, %s234
      %p236 = scmp.eq.s32.totalorder %s25, 0
      %p237 = por %p235, %p236
      %s239 = sadd.s32 %s238, 1
      %p242 = scmp.eq.s32.totalorder %s19, 3
      %p243 = scmp.ne.s32.totalorder %s238, %s240
      %p244 = scmp.eq.s32.totalorder %s19, 0
      %p245 = por %p243, %p244
      %p246 = scmp.ne.s32.totalorder %s238, %s240
      %p247 = scmp.eq.s32.totalorder %s24, 3
      %p248 = por %p246, %p247
      %p249 = scmp.ne.s32.totalorder %s240, %s241
      %p250 = scmp.eq.s32.totalorder %s24, 0
      %p251 = por %p249, %p250
      %p252 = scmp.ne.s32.totalorder %s240, %s241
      %p253 = scmp.eq.s32.totalorder %s25, 3
      %p254 = por %p252, %p253
      %p256 = scmp.ne.s32.totalorder %s241, %s255
      %p257 = scmp.eq.s32.totalorder %s25, 0
      %p258 = por %p256, %p257
      %s259 = ssub.s32 %s26, %s38
      %p260 = scmp.eq.s32.totalorder %s259, 0
      %s262 = sadd.s32 %s261, 1
      %s263 = scalar_select %p260, %s261, %s262
      %p266 = pneg %p260
      %p267 = scmp.eq.s32.totalorder %s19, 3
      %p268 = por %p266, %p267
      %p269 = scmp.ne.s32.totalorder %s261, %s264
      %p270 = scmp.eq.s32.totalorder %s19, 0
      %p271 = por %p269, %p270
      %p272 = scmp.ne.s32.totalorder %s261, %s264
      %p273 = scmp.eq.s32.totalorder %s24, 3
      %p274 = por %p272, %p273
      %p275 = scmp.ne.s32.totalorder %s264, %s265
      %p276 = scmp.eq.s32.totalorder %s24, 0
      %p277 = por %p275, %p276
      %p278 = scmp.ne.s32.totalorder %s264, %s265
      %p279 = scmp.eq.s32.totalorder %s25, 3
      %p280 = por %p278, %p279
      %p282 = scmp.ne.s32.totalorder %s265, %s281
      %p283 = scmp.eq.s32.totalorder %s25, 0
      %p284 = por %p282, %p283
      %p285 = scmp.le.s32.totalorder 1, %s19
      %p286 = scmp.lt.s32.totalorder %s19, 5
      %p287 = pnand %p285, %p286
      %p288 = pneg %p287
      // Predicated region
      $region9: #{tpu_custom_call.1} parent=5 // pred_check
        _
      $region10: #{tpu_custom_call.1} parent=5 // pred_check_branch
        %290 = sbr.rel (%p287) target = $region12
      $region11: #{tpu_custom_call.1} parent=5 // pred_region
        %s291 = ssub.s32 %s19, 1
        // Predicated region
        $region13: #{tpu_custom_call.1} parent=11 // pred_check
          %p292 = pneg %p104
        $region14: #{tpu_custom_call.1} parent=11 // pred_check_branch
          %294 = sbr.rel (%p292) target = $region16
        $region15: #{tpu_custom_call.1} parent=11 // pred_region
          _
        $region16: #{tpu_custom_call.1} parent=11 // pred_fallthru
          _
        // Predicated region
        $region17: #{tpu_custom_call.1} parent=11 // pred_check
          %p295 = pneg %p125
        $region18: #{tpu_custom_call.1} parent=11 // pred_check_branch
          %297 = sbr.rel (%p295) target = $region20
        $region19: #{tpu_custom_call.1} parent=11 // pred_region
          _
        $region20: #{tpu_custom_call.1} parent=11 // pred_fallthru
          _
        // Predicated region
        $region21: #{tpu_custom_call.1} parent=11 // pred_check
          %p298 = pneg %p146
        $region22: #{tpu_custom_call.1} parent=11 // pred_check_branch
          %300 = sbr.rel (%p298) target = $region24
        $region23: #{tpu_custom_call.1} parent=11 // pred_region
          _
        $region24: #{tpu_custom_call.1} parent=11 // pred_fallthru
          _
        // Predicated region
        $region25: #{tpu_custom_call.1} parent=11 // pred_check
          %p301 = pneg %p167
        $region26: #{tpu_custom_call.1} parent=11 // pred_check_branch
          %303 = sbr.rel (%p301) target = $region28
        $region27: #{tpu_custom_call.1} parent=11 // pred_region
          _
        $region28: #{tpu_custom_call.1} parent=11 // pred_fallthru
          _
        // Predicated region
        $region29: #{tpu_custom_call.1} parent=11 // pred_check
          %p304 = pneg %p188
        $region30: #{tpu_custom_call.1} parent=11 // pred_check_branch
          %306 = sbr.rel (%p304) target = $region32
        $region31: #{tpu_custom_call.1} parent=11 // pred_region
          _
        $region32: #{tpu_custom_call.1} parent=11 // pred_fallthru
          _
        // Predicated region
        $region33: #{tpu_custom_call.1} parent=11 // pred_check
          %p307 = pneg %p209
        $region34: #{tpu_custom_call.1} parent=11 // pred_check_branch
          %309 = sbr.rel (%p307) target = $region36
        $region35: #{tpu_custom_call.1} parent=11 // pred_region
          _
        $region36: #{tpu_custom_call.1} parent=11 // pred_fallthru
          _
        // Predicated region
        $region37: #{tpu_custom_call.1} parent=11 // pred_check
          %p310 = pneg %p230
        $region38: #{tpu_custom_call.1} parent=11 // pred_check_branch
          %312 = sbr.rel (%p310) target = $region40
        $region39: #{tpu_custom_call.1} parent=11 // pred_region
          _
        $region40: #{tpu_custom_call.1} parent=11 // pred_fallthru
          _
        // Predicated region
        $region41: #{tpu_custom_call.1} parent=11 // pred_check
          %p313 = pneg %p251
        $region42: #{tpu_custom_call.1} parent=11 // pred_check_branch
          %315 = sbr.rel (%p313) target = $region44
        $region43: #{tpu_custom_call.1} parent=11 // pred_region
          _
        $region44: #{tpu_custom_call.1} parent=11 // pred_fallthru
          _
      $region12: #{tpu_custom_call.1} parent=5 // pred_fallthru
        _
      %p316 = scmp.lt.s32.totalorder %s19, 4
      // Predicated region
      $region45: #{tpu_custom_call.1} parent=5 // pred_check
        %p317 = pneg %p316
      $region46: #{tpu_custom_call.1} parent=5 // pred_check_branch
        %319 = sbr.rel (%p317) target = $region48
      $region47: #{tpu_custom_call.1} parent=5 // pred_region
        // Predicated region
        $region49: #{tpu_custom_call.1} parent=47 // pred_check
          %p320 = pneg %p51
        $region50: #{tpu_custom_call.1} parent=47 // pred_check_branch
          %322 = sbr.rel (%p320) target = $region52
        $region51: #{tpu_custom_call.1} parent=47 // pred_region
          %p323 = scmp.lt.s32.totalorder %s26, 1
          %s324 = scalar_select %p323, %s26, 1
          %s325 = smul.addr %s324, 2
          %s326 = smul.addr %s325, 8
          %s327 = scalar_lea.vmem %s0, %s326
        $region52: #{tpu_custom_call.1} parent=47 // pred_fallthru
          _
        // Predicated region
        $region53: #{tpu_custom_call.1} parent=47 // pred_check
          %p328 = pneg %p77
        $region54: #{tpu_custom_call.1} parent=47 // pred_check_branch
          %330 = sbr.rel (%p328) target = $region56
        $region55: #{tpu_custom_call.1} parent=47 // pred_region
          %p331 = scmp.lt.s32.totalorder %s26, 1
          %s332 = scalar_select %p331, %s26, 1
          %s333 = smul.addr %s332, 8
          %s334 = scalar_lea.vmem %s1, %s333
        $region56: #{tpu_custom_call.1} parent=47 // pred_fallthru
          _
      $region48: #{tpu_custom_call.1} parent=5 // pred_fallthru
        _
      %p335 = scmp.le.s32.totalorder 1, %s19
      %p336 = scmp.lt.s32.totalorder %s19, 5
      %p337 = pnand %p335, %p336
      %p338 = pneg %p337
      // Predicated region
      $region57: #{tpu_custom_call.1} parent=5 // pred_check
        _
      $region58: #{tpu_custom_call.1} parent=5 // pred_check_branch
        %340 = sbr.rel (%p337) target = $region60
      $region59: #{tpu_custom_call.1} parent=5 // pred_region
        %s341 = ssub.s32 %s19, 1
        %p342 = scmp.lt.s32.totalorder %s28, 1
        %s343 = scalar_select %p342, %s28, 1
        %s344 = smul.addr %s343, 2
        %s345 = smul.addr %s344, 8
        %s346 = scalar_lea.vmem %s0, %s345
        %p347 = pneg %p57
        %p348 = pneg %p54
        %p349 = scmp.lt.s32.totalorder %s28, 1
        %s350 = scalar_select %p349, %s28, 1
        %s351 = smul.addr %s350, 8
        %s352 = scalar_lea.vmem %s1, %s351
        %p353 = pneg %p83
        %p354 = pneg %p80
        %p355 = pneg %p104
        %p356 = pneg %p101
        %p357 = pneg %p125
        %p358 = pneg %p122
        %p359 = pneg %p146
        %p360 = pneg %p143
        %p361 = pneg %p167
        %p362 = pneg %p164
        %p363 = pneg %p188
        %p364 = pneg %p185
        %p365 = pneg %p209
        %p366 = pneg %p206
        %p367 = pneg %p230
        %p368 = pneg %p227
        %p369 = pneg %p251
        %p370 = pneg %p248
        %p371 = pneg %p277
        %p372 = pneg %p274
        %s373 = sand.u32 %s264, 1
        %s374 = scalar_lea.sflag [#allocation6], %s373
        %s375 = sand.u32 %s264, 1
        %s376 = smul.addr %s375, 8
        %s377 = scalar_lea.vmem [#allocation5], %s376
        %p378 = scmp.lt.s32.totalorder %s28, 1
        %s379 = scalar_select %p378, %s28, 1
        %s380 = smul.addr %s379, 2
        %s381 = smul.addr %s380, 8
        %s382 = scalar_lea.vmem %s0, %s381
        %p383 = scmp.lt.s32.totalorder %s28, 1
        %s384 = scalar_select %p383, %s28, 1
        %s385 = smul.addr %s384, 8
        %s386 = scalar_lea.vmem %s1, %s385
        %p387 = scmp.eq.s32.totalorder %s29, 0
        // Predicated region
        $region61: #{tpu_custom_call.1} parent=59 // pred_check
          %p388 = pneg %p387
        $region62: #{tpu_custom_call.1} parent=59 // pred_check_branch
          %390 = sbr.rel (%p388) target = $region64
        $region63: #{tpu_custom_call.1} parent=59 // pred_region
          %v391 = vld [vmem:[%s382] sm:$0xff]
          %v392 = vld [vmem:[%s382 + $0x8] sm:$0xff]
          %v393 = vld [vmem:[%s2] sm:$0x1]
          %v394 = vld [vmem:[%s3] sm:$0x1]
          %395 = vadd.xlane.f32.xlu0 %v391
          %v396 = vpop.xlane.xlu0 %395
          %397 = vadd.xlane.f32.xlu0 %v392
          %v398 = vpop.xlane.xlu0 %397
          %v399 = vrcp.pop 128.0
          %v400 = vmul.f32 %v396, %v399
          %v401 = vmul.f32 %v398, %v399
          %v402 = vsub.f32 %v391, %v400
          %v403 = vsub.f32 %v392, %v401
          %v404 = vmul.f32 %v402, %v402
          %v405 = vmul.f32 %v403, %v403
          %406 = vadd.xlane.f32.xlu0 %v404
          %v407 = vpop.xlane.xlu0 %406
          %408 = vadd.xlane.f32.xlu0 %v405
          %v409 = vpop.xlane.xlu0 %408
          %v410 = vmul.f32 %v407, %v399
          %v411 = vmul.f32 %v409, %v399
          %v412 = vadd.f32 %v410, 1e-05
          %v413 = vadd.f32 %v411, 1e-05
          %v414 = vrsqrt.pop %v412
          %v415 = vrsqrt.pop %v413
          %v416 = vmul.f32 %v402, %v414
          %v417 = vmul.f32 %v403, %v415
          %v419 = vlaneseq
          %v420 = vshrl.u32 %v419, 7
          %v421 = vsub.s32 0, %v420
          %v422 = vrot.slane %v393, %v421
          %v424 = vmul.f32 %v416, %v422
          %v425 = vmul.f32 %v417, %v422
          %v427 = vlaneseq
          %v428 = vshrl.u32 %v427, 7
          %v429 = vsub.s32 0, %v428
          %v430 = vrot.slane %v394, %v429
          %v432 = vadd.f32 %v424, %v430
          %v433 = vadd.f32 %v425, %v430
          %434 = vst [vmem:[#allocation2] sm:$0xff] %v432
          %435 = vst [vmem:[#allocation2 + $0x8] sm:$0xff] %v433
          %v436 = vld [vmem:[%s386] sm:$0xff]
          %v437 = vld [vmem:[%s4] sm:$0x1]
          %v438 = vld [vmem:[%s5] sm:$0x1]
          %439 = vadd.xlane.f32.xlu0 %v436
          %v440 = vpop.xlane.xlu0 %439
          %v441 = vmul.f32 %v440, %v399
          %v442 = vsub.f32 %v436, %v441
          %v443 = vmul.f32 %v442, %v442
          %444 = vadd.xlane.f32.xlu0 %v443
          %v445 = vpop.xlane.xlu0 %444
          %v446 = vmul.f32 %v445, %v399
          %v447 = vadd.f32 %v446, 1e-05
          %v448 = vrsqrt.pop %v447
          %v449 = vmul.f32 %v442, %v448
          %v451 = vlaneseq
          %v452 = vshrl.u32 %v451, 7
          %v453 = vsub.s32 0, %v452
          %v454 = vrot.slane %v437, %v453
          %v456 = vmul.f32 %v449, %v454
          %v458 = vlaneseq
          %v459 = vshrl.u32 %v458, 7
          %v460 = vsub.s32 0, %v459
          %v461 = vrot.slane %v438, %v460
          %v463 = vadd.f32 %v456, %v461
          %464 = vst [vmem:[#allocation3] sm:$0xff] %v463
          %465 = vst [vmem:[#allocation4] sm:$0xff] 0.0
        $region64: #{tpu_custom_call.1} parent=59 // pred_fallthru
          _
        %s466 = smul.u32 %s29, 128
        %s467 = scalar_lea.vmem %s6, %s466
        %v468 = vld [vmem:[%s467] sm:$0xff]
        %v469 = vld [vmem:[%s467 + $0x8] sm:$0xff]
        %v470 = vld [vmem:[%s467 + $0x10] sm:$0xff]
        %v471 = vld [vmem:[%s467 + $0x18] sm:$0xff]
        %v472 = vld [vmem:[%s467 + $0x20] sm:$0xff]
        %v473 = vld [vmem:[%s467 + $0x28] sm:$0xff]
        %v474 = vld [vmem:[%s467 + $0x30] sm:$0xff]
        %v475 = vld [vmem:[%s467 + $0x38] sm:$0xff]
        %v476 = vld [vmem:[%s467 + $0x40] sm:$0xff]
        %v477 = vld [vmem:[%s467 + $0x48] sm:$0xff]
        %v478 = vld [vmem:[%s467 + $0x50] sm:$0xff]
        %v479 = vld [vmem:[%s467 + $0x58] sm:$0xff]
        %v480 = vld [vmem:[%s467 + $0x60] sm:$0xff]
        %v481 = vld [vmem:[%s467 + $0x68] sm:$0xff]
        %v482 = vld [vmem:[%s467 + $0x70] sm:$0xff]
        %v483 = vld [vmem:[%s467 + $0x78] sm:$0xff]
        %s484 = scalar_lea.vmem %s7, %s466
        %v485 = vld [vmem:[%s484] sm:$0xff]
        %v486 = vld [vmem:[%s484 + $0x8] sm:$0xff]
        %v487 = vld [vmem:[%s484 + $0x10] sm:$0xff]
        %v488 = vld [vmem:[%s484 + $0x18] sm:$0xff]
        %v489 = vld [vmem:[%s484 + $0x20] sm:$0xff]
        %v490 = vld [vmem:[%s484 + $0x28] sm:$0xff]
        %v491 = vld [vmem:[%s484 + $0x30] sm:$0xff]
        %v492 = vld [vmem:[%s484 + $0x38] sm:$0xff]
        %v493 = vld [vmem:[%s484 + $0x40] sm:$0xff]
        %v494 = vld [vmem:[%s484 + $0x48] sm:$0xff]
        %v495 = vld [vmem:[%s484 + $0x50] sm:$0xff]
        %v496 = vld [vmem:[%s484 + $0x58] sm:$0xff]
        %v497 = vld [vmem:[%s484 + $0x60] sm:$0xff]
        %v498 = vld [vmem:[%s484 + $0x68] sm:$0xff]
        %v499 = vld [vmem:[%s484 + $0x70] sm:$0xff]
        %v500 = vld [vmem:[%s484 + $0x78] sm:$0xff]
        %s501 = scalar_lea.vmem %s8, %s466
        %v502 = vld [vmem:[%s501] sm:$0xff]
        %v503 = vld [vmem:[%s501 + $0x8] sm:$0xff]
        %v504 = vld [vmem:[%s501 + $0x10] sm:$0xff]
        %v505 = vld [vmem:[%s501 + $0x18] sm:$0xff]
        %v506 = vld [vmem:[%s501 + $0x20] sm:$0xff]
        %v507 = vld [vmem:[%s501 + $0x28] sm:$0xff]
        %v508 = vld [vmem:[%s501 + $0x30] sm:$0xff]
        %v509 = vld [vmem:[%s501 + $0x38] sm:$0xff]
        %v510 = vld [vmem:[%s501 + $0x40] sm:$0xff]
        %v511 = vld [vmem:[%s501 + $0x48] sm:$0xff]
        %v512 = vld [vmem:[%s501 + $0x50] sm:$0xff]
        %v513 = vld [vmem:[%s501 + $0x58] sm:$0xff]
        %v514 = vld [vmem:[%s501 + $0x60] sm:$0xff]
        %v515 = vld [vmem:[%s501 + $0x68] sm:$0xff]
        %v516 = vld [vmem:[%s501 + $0x70] sm:$0xff]
        %v517 = vld [vmem:[%s501 + $0x78] sm:$0xff]
        %s518 = smul.u32 %s29, 64
        %s519 = scalar_lea.vmem %s9, %s518
        %v520 = vld [vmem:[%s519] sm:$0xff]
        %v521 = vld [vmem:[%s519 + $0x8] sm:$0xff]
        %v522 = vld [vmem:[%s519 + $0x10] sm:$0xff]
        %v523 = vld [vmem:[%s519 + $0x18] sm:$0xff]
        %v524 = vld [vmem:[%s519 + $0x20] sm:$0xff]
        %v525 = vld [vmem:[%s519 + $0x28] sm:$0xff]
        %v526 = vld [vmem:[%s519 + $0x30] sm:$0xff]
        %v527 = vld [vmem:[%s519 + $0x38] sm:$0xff]
        %v528 = vld [vmem:[#allocation2] sm:$0xff]
        %v529 = vld [vmem:[#allocation2 + $0x8] sm:$0xff]
        %v530 = vld [vmem:[#allocation3] sm:$0xff]
        %531 = vmatprep.subr.mxu0 0.0
        %532 = vmatpush1.msra.mxu0 %v468
        %533 = vmatprep.subr.mxu0 0.0
        %534 = vmatpush1.msra.mxu0 %v469
        %535 = vmatprep.subr.mxu0 0.0
        %536 = vmatpush1.msra.mxu0 %v470
        %537 = vmatprep.subr.mxu0 0.0
        %538 = vmatpush1.msra.mxu0 %v471
        %539 = vmatprep.subr.mxu0 0.0
        %540 = vmatpush1.msra.mxu0 %v472
        %541 = vmatprep.subr.mxu0 0.0
        %542 = vmatpush1.msra.mxu0 %v473
        %543 = vmatprep.subr.mxu0 0.0
        %544 = vmatpush1.msra.mxu0 %v474
        %545 = vmatprep.subr.mxu0 0.0
        %546 = vmatpush1.msra.mxu0 %v475
        %547 = vmatprep.subr.mxu0 0.0
        %548 = vmatpush1.msra.mxu0 %v476
        %549 = vmatprep.subr.mxu0 0.0
        %550 = vmatpush1.msra.mxu0 %v477
        %551 = vmatprep.subr.mxu0 0.0
        %552 = vmatpush1.msra.mxu0 %v478
        %553 = vmatprep.subr.mxu0 0.0
        %554 = vmatpush1.msra.mxu0 %v479
        %555 = vmatprep.subr.mxu0 0.0
        %556 = vmatpush1.msra.mxu0 %v480
        %557 = vmatprep.subr.mxu0 0.0
        %558 = vmatpush1.msra.mxu0 %v481
        %559 = vmatprep.subr.mxu0 0.0
        %560 = vmatpush1.msra.mxu0 %v482
        %561 = vmatprep.subr.mxu0 0.0
        %562 = vmatpush1.msra.mxu0 %v483
        %563 = vmatprep.subr.mxu0 0.0
        %564 = vmatpush1.msra.mxu0 0.0
        %565 = vmatprep.subr.mxu0 0.0
        %566 = vmatpush1.msra.mxu0 0.0
        %567 = vmatprep.subr.mxu0 0.0
        %568 = vmatpush1.msra.mxu0 0.0
        %569 = vmatprep.subr.mxu0 0.0
        %570 = vmatpush1.msra.mxu0 0.0
        %571 = vmatprep.subr.mxu0 0.0
        %572 = vmatpush1.msra.mxu0 0.0
        %573 = vmatprep.subr.mxu0 0.0
        %574 = vmatpush1.msra.mxu0 0.0
        %575 = vmatprep.subr.mxu0 0.0
        %576 = vmatpush1.msra.mxu0 0.0
        %577 = vmatprep.subr.mxu0 0.0
        %578 = vmatpush1.msra.mxu0 0.0
        %579 = vmatprep.subr.mxu0 0.0
        %580 = vmatpush1.msra.mxu0 0.0
        %581 = vmatprep.subr.mxu0 0.0
        %582 = vmatpush1.msra.mxu0 0.0
        %583 = vmatprep.subr.mxu0 0.0
        %584 = vmatpush1.msra.mxu0 0.0
        %585 = vmatprep.subr.mxu0 0.0
        %586 = vmatpush1.msra.mxu0 0.0
        %587 = vmatprep.subr.mxu0 0.0
        %588 = vmatpush1.msra.mxu0 0.0
        %589 = vmatprep.subr.mxu0 0.0
        %590 = vmatpush1.msra.mxu0 0.0
        %591 = vmatprep.subr.mxu0 0.0
        %592 = vmatpush1.msra.mxu0 0.0
        %593 = vmatprep.subr.mxu0 0.0
        %594 = vmatpush1.msra.mxu0 0.0
        %595 = vmatprep.mubr.f32.mxu0 0.0
        %596 = vmatmul.mubr.f32.gmra.mrb[0].mxu0 %v530
        %v597 = vpop.f32.mrb[0].mxu0
        %v598 = vadd.f32 0.0, %v597
        %v599 = vpop.f32.mrb[0].mxu0
        %600 = vdwg.mxu0
        %601 = vmatprep.subr.mxu0 0.0
        %602 = vmatpush1.msra.mxu0 %v485
        %603 = vmatprep.subr.mxu0 0.0
        %604 = vmatpush1.msra.mxu0 %v486
        %605 = vmatprep.subr.mxu0 0.0
        %606 = vmatpush1.msra.mxu0 %v487
        %607 = vmatprep.subr.mxu0 0.0
        %608 = vmatpush1.msra.mxu0 %v488
        %609 = vmatprep.subr.mxu0 0.0
        %610 = vmatpush1.msra.mxu0 %v489
        %611 = vmatprep.subr.mxu0 0.0
        %612 = vmatpush1.msra.mxu0 %v490
        %613 = vmatprep.subr.mxu0 0.0
        %614 = vmatpush1.msra.mxu0 %v491
        %615 = vmatprep.subr.mxu0 0.0
        %616 = vmatpush1.msra.mxu0 %v492
        %617 = vmatprep.subr.mxu0 0.0
        %618 = vmatpush1.msra.mxu0 %v493
        %619 = vmatprep.subr.mxu0 0.0
        %620 = vmatpush1.msra.mxu0 %v494
        %621 = vmatprep.subr.mxu0 0.0
        %622 = vmatpush1.msra.mxu0 %v495
        %623 = vmatprep.subr.mxu0 0.0
        %624 = vmatpush1.msra.mxu0 %v496
        %625 = vmatprep.subr.mxu0 0.0
        %626 = vmatpush1.msra.mxu0 %v497
        %627 = vmatprep.subr.mxu0 0.0
        %628 = vmatpush1.msra.mxu0 %v498
        %629 = vmatprep.subr.mxu0 0.0
        %630 = vmatpush1.msra.mxu0 %v499
        %631 = vmatprep.subr.mxu0 0.0
        %632 = vmatpush1.msra.mxu0 %v500
        %633 = vmatprep.subr.mxu0 0.0
        %634 = vmatpush1.msra.mxu0 0.0
        %635 = vmatprep.subr.mxu0 0.0
        %636 = vmatpush1.msra.mxu0 0.0
        %637 = vmatprep.subr.mxu0 0.0
        %638 = vmatpush1.msra.mxu0 0.0
        %639 = vmatprep.subr.mxu0 0.0
        %640 = vmatpush1.msra.mxu0 0.0
        %641 = vmatprep.subr.mxu0 0.0
        %642 = vmatpush1.msra.mxu0 0.0
        %643 = vmatprep.subr.mxu0 0.0
        %644 = vmatpush1.msra.mxu0 0.0
        %645 = vmatprep.subr.mxu0 0.0
        %646 = vmatpush1.msra.mxu0 0.0
        %647 = vmatprep.subr.mxu0 0.0
        %648 = vmatpush1.msra.mxu0 0.0
        %649 = vmatprep.subr.mxu0 0.0
        %650 = vmatpush1.msra.mxu0 0.0
        %651 = vmatprep.subr.mxu0 0.0
        %652 = vmatpush1.msra.mxu0 0.0
        %653 = vmatprep.subr.mxu0 0.0
        %654 = vmatpush1.msra.mxu0 0.0
        %655 = vmatprep.subr.mxu0 0.0
        %656 = vmatpush1.msra.mxu0 0.0
        %657 = vmatprep.subr.mxu0 0.0
        %658 = vmatpush1.msra.mxu0 0.0
        %659 = vmatprep.subr.mxu0 0.0
        %660 = vmatpush1.msra.mxu0 0.0
        %661 = vmatprep.subr.mxu0 0.0
        %662 = vmatpush1.msra.mxu0 0.0
        %663 = vmatprep.subr.mxu0 0.0
        %664 = vmatpush1.msra.mxu0 0.0
        %665 = vmatprep.mubr.f32.mxu0 0.0
        %666 = vmatmul.mubr.f32.gmra.mrb[0].mxu0 %v528
        %v667 = vpop.f32.mrb[0].mxu0
        %v668 = vadd.f32 0.0, %v667
        %v669 = vpop.f32.mrb[0].mxu0
        %670 = vmatprep.mubr.f32.mxu0 0.0
        %671 = vmatmul.mubr.f32.gmra.mrb[0].mxu0 %v529
        %v672 = vpop.f32.mrb[0].mxu0
        %v673 = vadd.f32 0.0, %v672
        %v674 = vpop.f32.mrb[0].mxu0
        %675 = vdwg.mxu0
        %676 = vmatprep.subr.mxu0 0.0
        %677 = vmatpush1.msra.mxu0 %v485
        %678 = vmatprep.subr.mxu0 0.0
        %679 = vmatpush1.msra.mxu0 %v486
        %680 = vmatprep.subr.mxu0 0.0
        %681 = vmatpush1.msra.mxu0 %v487
        %682 = vmatprep.subr.mxu0 0.0
        %683 = vmatpush1.msra.mxu0 %v488
        %684 = vmatprep.subr.mxu0 0.0
        %685 = vmatpush1.msra.mxu0 %v489
        %686 = vmatprep.subr.mxu0 0.0
        %687 = vmatpush1.msra.mxu0 %v490
        %688 = vmatprep.subr.mxu0 0.0
        %689 = vmatpush1.msra.mxu0 %v491
        %690 = vmatprep.subr.mxu0 0.0
        %691 = vmatpush1.msra.mxu0 %v492
        %692 = vmatprep.subr.mxu0 0.0
        %693 = vmatpush1.msra.mxu0 %v493
        %694 = vmatprep.subr.mxu0 0.0
        %695 = vmatpush1.msra.mxu0 %v494
        %696 = vmatprep.subr.mxu0 0.0
        %697 = vmatpush1.msra.mxu0 %v495
        %698 = vmatprep.subr.mxu0 0.0
        %699 = vmatpush1.msra.mxu0 %v496
        %700 = vmatprep.subr.mxu0 0.0
        %701 = vmatpush1.msra.mxu0 %v497
        %702 = vmatprep.subr.mxu0 0.0
        %703 = vmatpush1.msra.mxu0 %v498
        %704 = vmatprep.subr.mxu0 0.0
        %705 = vmatpush1.msra.mxu0 %v499
        %706 = vmatprep.subr.mxu0 0.0
        %707 = vmatpush1.msra.mxu0 %v500
        %708 = vmatprep.subr.mxu0 0.0
        %709 = vmatpush1.msra.mxu0 0.0
        %710 = vmatprep.subr.mxu0 0.0
        %711 = vmatpush1.msra.mxu0 0.0
        %712 = vmatprep.subr.mxu0 0.0
        %713 = vmatpush1.msra.mxu0 0.0
        %714 = vmatprep.subr.mxu0 0.0
        %715 = vmatpush1.msra.mxu0 0.0
        %716 = vmatprep.subr.mxu0 0.0
        %717 = vmatpush1.msra.mxu0 0.0
        %718 = vmatprep.subr.mxu0 0.0
        %719 = vmatpush1.msra.mxu0 0.0
        %720 = vmatprep.subr.mxu0 0.0
        %721 = vmatpush1.msra.mxu0 0.0
        %722 = vmatprep.subr.mxu0 0.0
        %723 = vmatpush1.msra.mxu0 0.0
        %724 = vmatprep.subr.mxu0 0.0
        %725 = vmatpush1.msra.mxu0 0.0
        %726 = vmatprep.subr.mxu0 0.0
        %727 = vmatpush1.msra.mxu0 0.0
        %728 = vmatprep.subr.mxu0 0.0
        %729 = vmatpush1.msra.mxu0 0.0
        %730 = vmatprep.subr.mxu0 0.0
        %731 = vmatpush1.msra.mxu0 0.0
        %732 = vmatprep.subr.mxu0 0.0
        %733 = vmatpush1.msra.mxu0 0.0
        %734 = vmatprep.subr.mxu0 0.0
        %735 = vmatpush1.msra.mxu0 0.0
        %736 = vmatprep.subr.mxu0 0.0
        %737 = vmatpush1.msra.mxu0 0.0
        %738 = vmatprep.subr.mxu0 0.0
        %739 = vmatpush1.msra.mxu0 0.0
        %740 = vmatprep.mubr.f32.mxu0 0.0
        %741 = vmatmul.mubr.f32.gmra.mrb[0].mxu0 %v530
        %v742 = vpop.f32.mrb[0].mxu0
        %v743 = vadd.f32 0.0, %v742
        %v744 = vpop.f32.mrb[0].mxu0
        %745 = vdwg.mxu0
        %746 = vmatprep.subr.mxu0 0.0
        %747 = vmatpush1.msra.mxu0 %v502
        %748 = vmatprep.subr.mxu0 0.0
        %749 = vmatpush1.msra.mxu0 %v503
        %750 = vmatprep.subr.mxu0 0.0
        %751 = vmatpush1.msra.mxu0 %v504
        %752 = vmatprep.subr.mxu0 0.0
        %753 = vmatpush1.msra.mxu0 %v505
        %754 = vmatprep.subr.mxu0 0.0
        %755 = vmatpush1.msra.mxu0 %v506
        %756 = vmatprep.subr.mxu0 0.0
        %757 = vmatpush1.msra.mxu0 %v507
        %758 = vmatprep.subr.mxu0 0.0
        %759 = vmatpush1.msra.mxu0 %v508
        %760 = vmatprep.subr.mxu0 0.0
        %761 = vmatpush1.msra.mxu0 %v509
        %762 = vmatprep.subr.mxu0 0.0
        %763 = vmatpush1.msra.mxu0 %v510
        %764 = vmatprep.subr.mxu0 0.0
        %765 = vmatpush1.msra.mxu0 %v511
        %766 = vmatprep.subr.mxu0 0.0
        %767 = vmatpush1.msra.mxu0 %v512
        %768 = vmatprep.subr.mxu0 0.0
        %769 = vmatpush1.msra.mxu0 %v513
        %770 = vmatprep.subr.mxu0 0.0
        %771 = vmatpush1.msra.mxu0 %v514
        %772 = vmatprep.subr.mxu0 0.0
        %773 = vmatpush1.msra.mxu0 %v515
        %774 = vmatprep.subr.mxu0 0.0
        %775 = vmatpush1.msra.mxu0 %v516
        %776 = vmatprep.subr.mxu0 0.0
        %777 = vmatpush1.msra.mxu0 %v517
        %778 = vmatprep.subr.mxu0 0.0
        %779 = vmatpush1.msra.mxu0 0.0
        %780 = vmatprep.subr.mxu0 0.0
        %781 = vmatpush1.msra.mxu0 0.0
        %782 = vmatprep.subr.mxu0 0.0
        %783 = vmatpush1.msra.mxu0 0.0
        %784 = vmatprep.subr.mxu0 0.0
        %785 = vmatpush1.msra.mxu0 0.0
        %786 = vmatprep.subr.mxu0 0.0
        %787 = vmatpush1.msra.mxu0 0.0
        %788 = vmatprep.subr.mxu0 0.0
        %789 = vmatpush1.msra.mxu0 0.0
        %790 = vmatprep.subr.mxu0 0.0
        %791 = vmatpush1.msra.mxu0 0.0
        %792 = vmatprep.subr.mxu0 0.0
        %793 = vmatpush1.msra.mxu0 0.0
        %794 = vmatprep.subr.mxu0 0.0
        %795 = vmatpush1.msra.mxu0 0.0
        %796 = vmatprep.subr.mxu0 0.0
        %797 = vmatpush1.msra.mxu0 0.0
        %798 = vmatprep.subr.mxu0 0.0
        %799 = vmatpush1.msra.mxu0 0.0
        %800 = vmatprep.subr.mxu0 0.0
        %801 = vmatpush1.msra.mxu0 0.0
        %802 = vmatprep.subr.mxu0 0.0
        %803 = vmatpush1.msra.mxu0 0.0
        %804 = vmatprep.subr.mxu0 0.0
        %805 = vmatpush1.msra.mxu0 0.0
        %806 = vmatprep.subr.mxu0 0.0
        %807 = vmatpush1.msra.mxu0 0.0
        %808 = vmatprep.subr.mxu0 0.0
        %809 = vmatpush1.msra.mxu0 0.0
        %810 = vmatprep.mubr.f32.mxu0 0.0
        %811 = vmatmul.mubr.f32.gmra.mrb[0].mxu0 %v528
        %v812 = vpop.f32.mrb[0].mxu0
        %v813 = vadd.f32 0.0, %v812
        %v814 = vpop.f32.mrb[0].mxu0
        %815 = vmatprep.mubr.f32.mxu0 0.0
        %816 = vmatmul.mubr.f32.gmra.mrb[0].mxu0 %v529
        %v817 = vpop.f32.mrb[0].mxu0
        %v818 = vadd.f32 0.0, %v817
        %v819 = vpop.f32.mrb[0].mxu0
        %820 = vdwg.mxu0
        %821 = vmatprep.subr.mxu0 0.0
        %822 = vmatpush1.msra.mxu0 %v502
        %823 = vmatprep.subr.mxu0 0.0
        %824 = vmatpush1.msra.mxu0 %v503
        %825 = vmatprep.subr.mxu0 0.0
        %826 = vmatpush1.msra.mxu0 %v504
        %827 = vmatprep.subr.mxu0 0.0
        %828 = vmatpush1.msra.mxu0 %v505
        %829 = vmatprep.subr.mxu0 0.0
        %830 = vmatpush1.msra.mxu0 %v506
        %831 = vmatprep.subr.mxu0 0.0
        %832 = vmatpush1.msra.mxu0 %v507
        %833 = vmatprep.subr.mxu0 0.0
        %834 = vmatpush1.msra.mxu0 %v508
        %835 = vmatprep.subr.mxu0 0.0
        %836 = vmatpush1.msra.mxu0 %v509
        %837 = vmatprep.subr.mxu0 0.0
        %838 = vmatpush1.msra.mxu0 %v510
        %839 = vmatprep.subr.mxu0 0.0
        %840 = vmatpush1.msra.mxu0 %v511
        %841 = vmatprep.subr.mxu0 0.0
        %842 = vmatpush1.msra.mxu0 %v512
        %843 = vmatprep.subr.mxu0 0.0
        %844 = vmatpush1.msra.mxu0 %v513
        %845 = vmatprep.subr.mxu0 0.0
        %846 = vmatpush1.msra.mxu0 %v514
        %847 = vmatprep.subr.mxu0 0.0
        %848 = vmatpush1.msra.mxu0 %v515
        %849 = vmatprep.subr.mxu0 0.0
        %850 = vmatpush1.msra.mxu0 %v516
        %851 = vmatprep.subr.mxu0 0.0
        %852 = vmatpush1.msra.mxu0 %v517
        %853 = vmatprep.subr.mxu0 0.0
        %854 = vmatpush1.msra.mxu0 0.0
        %855 = vmatprep.subr.mxu0 0.0
        %856 = vmatpush1.msra.mxu0 0.0
        %857 = vmatprep.subr.mxu0 0.0
        %858 = vmatpush1.msra.mxu0 0.0
        %859 = vmatprep.subr.mxu0 0.0
        %860 = vmatpush1.msra.mxu0 0.0
        %861 = vmatprep.subr.mxu0 0.0
        %862 = vmatpush1.msra.mxu0 0.0
        %863 = vmatprep.subr.mxu0 0.0
        %864 = vmatpush1.msra.mxu0 0.0
        %865 = vmatprep.subr.mxu0 0.0
        %866 = vmatpush1.msra.mxu0 0.0
        %867 = vmatprep.subr.mxu0 0.0
        %868 = vmatpush1.msra.mxu0 0.0
        %869 = vmatprep.subr.mxu0 0.0
        %870 = vmatpush1.msra.mxu0 0.0
        %871 = vmatprep.subr.mxu0 0.0
        %872 = vmatpush1.msra.mxu0 0.0
        %873 = vmatprep.subr.mxu0 0.0
        %874 = vmatpush1.msra.mxu0 0.0
        %875 = vmatprep.subr.mxu0 0.0
        %876 = vmatpush1.msra.mxu0 0.0
        %877 = vmatprep.subr.mxu0 0.0
        %878 = vmatpush1.msra.mxu0 0.0
        %879 = vmatprep.subr.mxu0 0.0
        %880 = vmatpush1.msra.mxu0 0.0
        %881 = vmatprep.subr.mxu0 0.0
        %882 = vmatpush1.msra.mxu0 0.0
        %883 = vmatprep.subr.mxu0 0.0
        %884 = vmatpush1.msra.mxu0 0.0
        %885 = vmatprep.mubr.f32.mxu0 0.0
        %886 = vmatmul.mubr.f32.gmra.mrb[0].mxu0 %v530
        %v887 = vpop.f32.mrb[0].mxu0
        %v888 = vadd.f32 0.0, %v887
        %v889 = vpop.f32.mrb[0].mxu0
        %890 = vdwg.mxu0
        %vm891 = vcmask 523264
        %v893 = vsel %vm891, %v598, 0
        %v896 = vsel %vm891, %v668, 0
        %v899 = vsel %vm891, %v673, 0
        %901 = vmatprep.subr.mxu0 0.0
        %902 = vmatpush1.xpose.msra.mxu0 %v896
        %903 = vmatprep.subr.mxu0 0.0
        %904 = vmatpush1.xpose.msra.mxu0 %v899
        %905 = vmatprep.subr.mxu0 0.0
        %906 = vmatpush1.xpose.msra.mxu0 0.0
        %907 = vmatprep.subr.mxu0 0.0
        %908 = vmatpush1.xpose.msra.mxu0 0.0
        %909 = vmatprep.subr.mxu0 0.0
        %910 = vmatpush1.xpose.msra.mxu0 0.0
        %911 = vmatprep.subr.mxu0 0.0
        %912 = vmatpush1.xpose.msra.mxu0 0.0
        %913 = vmatprep.subr.mxu0 0.0
        %914 = vmatpush1.xpose.msra.mxu0 0.0
        %915 = vmatprep.subr.mxu0 0.0
        %916 = vmatpush1.xpose.msra.mxu0 0.0
        %917 = vmatprep.subr.mxu0 0.0
        %918 = vmatpush1.xpose.msra.mxu0 0.0
        %919 = vmatprep.subr.mxu0 0.0
        %920 = vmatpush1.xpose.msra.mxu0 0.0
        %921 = vmatprep.subr.mxu0 0.0
        %922 = vmatpush1.xpose.msra.mxu0 0.0
        %923 = vmatprep.subr.mxu0 0.0
        %924 = vmatpush1.xpose.msra.mxu0 0.0
        %925 = vmatprep.subr.mxu0 0.0
        %926 = vmatpush1.xpose.msra.mxu0 0.0
        %927 = vmatprep.subr.mxu0 0.0
        %928 = vmatpush1.xpose.msra.mxu0 0.0
        %929 = vmatprep.subr.mxu0 0.0
        %930 = vmatpush1.xpose.msra.mxu0 0.0
        %931 = vmatprep.subr.mxu0 0.0
        %932 = vmatpush1.xpose.msra.mxu0 0.0
        %933 = vmatprep.subr.mxu0 0.0
        %934 = vmatpush1.xpose.msra.mxu0 0.0
        %935 = vmatprep.subr.mxu0 0.0
        %936 = vmatpush1.xpose.msra.mxu0 0.0
        %937 = vmatprep.subr.mxu0 0.0
        %938 = vmatpush1.xpose.msra.mxu0 0.0
        %939 = vmatprep.subr.mxu0 0.0
        %940 = vmatpush1.xpose.msra.mxu0 0.0
        %941 = vmatprep.subr.mxu0 0.0
        %942 = vmatpush1.xpose.msra.mxu0 0.0
        %943 = vmatprep.subr.mxu0 0.0
        %944 = vmatpush1.xpose.msra.mxu0 0.0
        %945 = vmatprep.subr.mxu0 0.0
        %946 = vmatpush1.xpose.msra.mxu0 0.0
        %947 = vmatprep.subr.mxu0 0.0
        %948 = vmatpush1.xpose.msra.mxu0 0.0
        %949 = vmatprep.subr.mxu0 0.0
        %950 = vmatpush1.xpose.msra.mxu0 0.0
        %951 = vmatprep.subr.mxu0 0.0
        %952 = vmatpush1.xpose.msra.mxu0 0.0
        %953 = vmatprep.subr.mxu0 0.0
        %954 = vmatpush1.xpose.msra.mxu0 0.0
        %955 = vmatprep.subr.mxu0 0.0
        %956 = vmatpush1.xpose.msra.mxu0 0.0
        %957 = vmatprep.subr.mxu0 0.0
        %958 = vmatpush1.xpose.msra.mxu0 0.0
        %959 = vmatprep.subr.mxu0 0.0
        %960 = vmatpush1.xpose.msra.mxu0 0.0
        %961 = vmatprep.subr.mxu0 0.0
        %962 = vmatpush1.xpose.msra.mxu0 0.0
        %963 = vmatprep.subr.mxu0 0.0
        %964 = vmatpush1.xpose.msra.mxu0 0.0
        %965 = vmatprep.mubr.f32.mxu0 0.0
        %966 = vmatmul.mubr.f32.gmra.mrb[0].mxu0 %v893
        %v967 = vpop.f32.mrb[0].mxu0
        %v968 = vadd.f32 0.0, %v967
        %v969 = vpop.f32.mrb[0].mxu0
        %970 = vdwg.mxu0
        %v972 = vsel %vm891, %v743, 0
        %974 = vmatprep.subr.mxu0 0.0
        %975 = vmatpush1.xpose.msra.mxu0 %v972
        %976 = vmatprep.subr.mxu0 0.0
        %977 = vmatpush1.xpose.msra.mxu0 0.0
        %978 = vmatprep.subr.mxu0 0.0
        %979 = vmatpush1.xpose.msra.mxu0 0.0
        %980 = vmatprep.subr.mxu0 0.0
        %981 = vmatpush1.xpose.msra.mxu0 0.0
        %982 = vmatprep.subr.mxu0 0.0
        %983 = vmatpush1.xpose.msra.mxu0 0.0
        %984 = vmatprep.subr.mxu0 0.0
        %985 = vmatpush1.xpose.msra.mxu0 0.0
        %986 = vmatprep.subr.mxu0 0.0
        %987 = vmatpush1.xpose.msra.mxu0 0.0
        %988 = vmatprep.subr.mxu0 0.0
        %989 = vmatpush1.xpose.msra.mxu0 0.0
        %990 = vmatprep.subr.mxu0 0.0
        %991 = vmatpush1.xpose.msra.mxu0 0.0
        %992 = vmatprep.subr.mxu0 0.0
        %993 = vmatpush1.xpose.msra.mxu0 0.0
        %994 = vmatprep.subr.mxu0 0.0
        %995 = vmatpush1.xpose.msra.mxu0 0.0
        %996 = vmatprep.subr.mxu0 0.0
        %997 = vmatpush1.xpose.msra.mxu0 0.0
        %998 = vmatprep.subr.mxu0 0.0
        %999 = vmatpush1.xpose.msra.mxu0 0.0
        %1000 = vmatprep.subr.mxu0 0.0
        %1001 = vmatpush1.xpose.msra.mxu0 0.0
        %1002 = vmatprep.subr.mxu0 0.0
        %1003 = vmatpush1.xpose.msra.mxu0 0.0
        %1004 = vmatprep.subr.mxu0 0.0
        %1005 = vmatpush1.xpose.msra.mxu0 0.0
        %1006 = vmatprep.subr.mxu0 0.0
        %1007 = vmatpush1.xpose.msra.mxu0 0.0
        %1008 = vmatprep.subr.mxu0 0.0
        %1009 = vmatpush1.xpose.msra.mxu0 0.0
        %1010 = vmatprep.subr.mxu0 0.0
        %1011 = vmatpush1.xpose.msra.mxu0 0.0
        %1012 = vmatprep.subr.mxu0 0.0
        %1013 = vmatpush1.xpose.msra.mxu0 0.0
        %1014 = vmatprep.subr.mxu0 0.0
        %1015 = vmatpush1.xpose.msra.mxu0 0.0
        %1016 = vmatprep.subr.mxu0 0.0
        %1017 = vmatpush1.xpose.msra.mxu0 0.0
        %1018 = vmatprep.subr.mxu0 0.0
        %1019 = vmatpush1.xpose.msra.mxu0 0.0
        %1020 = vmatprep.subr.mxu0 0.0
        %1021 = vmatpush1.xpose.msra.mxu0 0.0
        %1022 = vmatprep.subr.mxu0 0.0
        %1023 = vmatpush1.xpose.msra.mxu0 0.0
        %1024 = vmatprep.subr.mxu0 0.0
        %1025 = vmatpush1.xpose.msra.mxu0 0.0
        %1026 = vmatprep.subr.mxu0 0.0
        %1027 = vmatpush1.xpose.msra.mxu0 0.0
        %1028 = vmatprep.subr.mxu0 0.0
        %1029 = vmatpush1.xpose.msra.mxu0 0.0
        %1030 = vmatprep.subr.mxu0 0.0
        %1031 = vmatpush1.xpose.msra.mxu0 0.0
        %1032 = vmatprep.subr.mxu0 0.0
        %1033 = vmatpush1.xpose.msra.mxu0 0.0
        %1034 = vmatprep.subr.mxu0 0.0
        %1035 = vmatpush1.xpose.msra.mxu0 0.0
        %1036 = vmatprep.subr.mxu0 0.0
        %1037 = vmatpush1.xpose.msra.mxu0 0.0
        %1038 = vmatprep.mubr.f32.mxu0 0.0
        %1039 = vmatmul.mubr.f32.gmra.mrb[0].mxu0 %v893
        %v1040 = vpop.f32.mrb[0].mxu0
        %v1041 = vadd.f32 0.0, %v1040
        %v1042 = vpop.f32.mrb[0].mxu0
        %1043 = vdwg.mxu0
        %vm1044 = vcmask 130048
        %v1045 = vsel %vm1044, %v968, -inf
        %1046 = vmax.xlane.f32.xlu0 %v1045
        %v1047 = vpop.xlane.xlu0 %1046
        %vm1048 = vcmask 64512
        %v1049 = vsel %vm1048, %v1041, -inf
        %1050 = vmax.xlane.f32.xlu0 %v1049
        %v1051 = vpop.xlane.xlu0 %1050
        %v1052 = vmax.f32 %v1047, %v1051
        %v1053 = vsub.f32 %v968, %v1052
        %v1054 = vmul.f32 %v1053, 1.442695
        %v1055 = vpow.pop %v1054
        %v1056 = vsub.f32 %v1041, %v1052
        %v1057 = vmul.f32 %v1056, 1.442695
        %v1058 = vpow.pop %v1057
        %v1059 = vsel %vm1044, %v1055, 0.0
        %1060 = vadd.xlane.f32.xlu0 %v1059
        %v1061 = vpop.xlane.xlu0 %1060
        %v1062 = vsel %vm1048, %v1058, 0.0
        %1063 = vadd.xlane.f32.xlu0 %v1062
        %v1064 = vpop.xlane.xlu0 %1063
        %v1065 = vadd.f32 %v1061, %v1064
        %v1066 = vrcp.pop %v1065
        %v1068 = vsel %vm1048, %v1058, 0
        %1070 = vmatprep.subr.mxu0 0.0
        %1071 = vmatpush1.msra.mxu0 %v888
        %1072 = vmatprep.subr.mxu0 0.0
        %1073 = vmatpush1.msra.mxu0 0.0
        %1074 = vmatprep.subr.mxu0 0.0
        %1075 = vmatpush1.msra.mxu0 0.0
        %1076 = vmatprep.subr.mxu0 0.0
        %1077 = vmatpush1.msra.mxu0 0.0
        %1078 = vmatprep.subr.mxu0 0.0
        %1079 = vmatpush1.msra.mxu0 0.0
        %1080 = vmatprep.subr.mxu0 0.0
        %1081 = vmatpush1.msra.mxu0 0.0
        %1082 = vmatprep.subr.mxu0 0.0
        %1083 = vmatpush1.msra.mxu0 0.0
        %1084 = vmatprep.subr.mxu0 0.0
        %1085 = vmatpush1.msra.mxu0 0.0
        %1086 = vmatprep.subr.mxu0 0.0
        %1087 = vmatpush1.msra.mxu0 0.0
        %1088 = vmatprep.subr.mxu0 0.0
        %1089 = vmatpush1.msra.mxu0 0.0
        %1090 = vmatprep.subr.mxu0 0.0
        %1091 = vmatpush1.msra.mxu0 0.0
        %1092 = vmatprep.subr.mxu0 0.0
        %1093 = vmatpush1.msra.mxu0 0.0
        %1094 = vmatprep.subr.mxu0 0.0
        %1095 = vmatpush1.msra.mxu0 0.0
        %1096 = vmatprep.subr.mxu0 0.0
        %1097 = vmatpush1.msra.mxu0 0.0
        %1098 = vmatprep.subr.mxu0 0.0
        %1099 = vmatpush1.msra.mxu0 0.0
        %1100 = vmatprep.subr.mxu0 0.0
        %1101 = vmatpush1.msra.mxu0 0.0
        %1102 = vmatprep.subr.mxu0 0.0
        %1103 = vmatpush1.msra.mxu0 0.0
        %1104 = vmatprep.subr.mxu0 0.0
        %1105 = vmatpush1.msra.mxu0 0.0
        %1106 = vmatprep.subr.mxu0 0.0
        %1107 = vmatpush1.msra.mxu0 0.0
        %1108 = vmatprep.subr.mxu0 0.0
        %1109 = vmatpush1.msra.mxu0 0.0
        %1110 = vmatprep.subr.mxu0 0.0
        %1111 = vmatpush1.msra.mxu0 0.0
        %1112 = vmatprep.subr.mxu0 0.0
        %1113 = vmatpush1.msra.mxu0 0.0
        %1114 = vmatprep.subr.mxu0 0.0
        %1115 = vmatpush1.msra.mxu0 0.0
        %1116 = vmatprep.subr.mxu0 0.0
        %1117 = vmatpush1.msra.mxu0 0.0
        %1118 = vmatprep.subr.mxu0 0.0
        %1119 = vmatpush1.msra.mxu0 0.0
        %1120 = vmatprep.subr.mxu0 0.0
        %1121 = vmatpush1.msra.mxu0 0.0
        %1122 = vmatprep.subr.mxu0 0.0
        %1123 = vmatpush1.msra.mxu0 0.0
        %1124 = vmatprep.subr.mxu0 0.0
        %1125 = vmatpush1.msra.mxu0 0.0
        %1126 = vmatprep.subr.mxu0 0.0
        %1127 = vmatpush1.msra.mxu0 0.0
        %1128 = vmatprep.subr.mxu0 0.0
        %1129 = vmatpush1.msra.mxu0 0.0
        %1130 = vmatprep.subr.mxu0 0.0
        %1131 = vmatpush1.msra.mxu0 0.0
        %1132 = vmatprep.subr.mxu0 0.0
        %1133 = vmatpush1.msra.mxu0 0.0
        %1134 = vmatprep.mubr.f32.mxu0 0.0
        %1135 = vmatmul.mubr.f32.gmra.mrb[0].mxu0 %v1068
        %v1136 = vpop.f32.mrb[0].mxu0
        %v1137 = vadd.f32 0.0, %v1136
        %v1138 = vpop.f32.mrb[0].mxu0
        %1139 = vdwg.mxu0
        %v1141 = vsel %vm1044, %v1055, 0
        %1143 = vmatprep.subr.mxu0 0.0
        %1144 = vmatpush1.msra.mxu0 %v813
        %1145 = vmatprep.subr.mxu0 0.0
        %1146 = vmatpush1.msra.mxu0 %v818
        %1147 = vmatprep.subr.mxu0 0.0
        %1148 = vmatpush1.msra.mxu0 0.0
        %1149 = vmatprep.subr.mxu0 0.0
        %1150 = vmatpush1.msra.mxu0 0.0
        %1151 = vmatprep.subr.mxu0 0.0
        %1152 = vmatpush1.msra.mxu0 0.0
        %1153 = vmatprep.subr.mxu0 0.0
        %1154 = vmatpush1.msra.mxu0 0.0
        %1155 = vmatprep.subr.mxu0 0.0
        %1156 = vmatpush1.msra.mxu0 0.0
        %1157 = vmatprep.subr.mxu0 0.0
        %1158 = vmatpush1.msra.mxu0 0.0
        %1159 = vmatprep.subr.mxu0 0.0
        %1160 = vmatpush1.msra.mxu0 0.0
        %1161 = vmatprep.subr.mxu0 0.0
        %1162 = vmatpush1.msra.mxu0 0.0
        %1163 = vmatprep.subr.mxu0 0.0
        %1164 = vmatpush1.msra.mxu0 0.0
        %1165 = vmatprep.subr.mxu0 0.0
        %1166 = vmatpush1.msra.mxu0 0.0
        %1167 = vmatprep.subr.mxu0 0.0
        %1168 = vmatpush1.msra.mxu0 0.0
        %1169 = vmatprep.subr.mxu0 0.0
        %1170 = vmatpush1.msra.mxu0 0.0
        %1171 = vmatprep.subr.mxu0 0.0
        %1172 = vmatpush1.msra.mxu0 0.0
        %1173 = vmatprep.subr.mxu0 0.0
        %1174 = vmatpush1.msra.mxu0 0.0
        %1175 = vmatprep.subr.mxu0 0.0
        %1176 = vmatpush1.msra.mxu0 0.0
        %1177 = vmatprep.subr.mxu0 0.0
        %1178 = vmatpush1.msra.mxu0 0.0
        %1179 = vmatprep.subr.mxu0 0.0
        %1180 = vmatpush1.msra.mxu0 0.0
        %1181 = vmatprep.subr.mxu0 0.0
        %1182 = vmatpush1.msra.mxu0 0.0
        %1183 = vmatprep.subr.mxu0 0.0
        %1184 = vmatpush1.msra.mxu0 0.0
        %1185 = vmatprep.subr.mxu0 0.0
        %1186 = vmatpush1.msra.mxu0 0.0
        %1187 = vmatprep.subr.mxu0 0.0
        %1188 = vmatpush1.msra.mxu0 0.0
        %1189 = vmatprep.subr.mxu0 0.0
        %1190 = vmatpush1.msra.mxu0 0.0
        %1191 = vmatprep.subr.mxu0 0.0
        %1192 = vmatpush1.msra.mxu0 0.0
        %1193 = vmatprep.subr.mxu0 0.0
        %1194 = vmatpush1.msra.mxu0 0.0
        %1195 = vmatprep.subr.mxu0 0.0
        %1196 = vmatpush1.msra.mxu0 0.0
        %1197 = vmatprep.subr.mxu0 0.0
        %1198 = vmatpush1.msra.mxu0 0.0
        %1199 = vmatprep.subr.mxu0 0.0
        %1200 = vmatpush1.msra.mxu0 0.0
        %1201 = vmatprep.subr.mxu0 0.0
        %1202 = vmatpush1.msra.mxu0 0.0
        %1203 = vmatprep.subr.mxu0 0.0
        %1204 = vmatpush1.msra.mxu0 0.0
        %1205 = vmatprep.subr.mxu0 0.0
        %1206 = vmatpush1.msra.mxu0 0.0
        %1207 = vmatprep.mubr.f32.mxu0 0.0
        %1208 = vmatmul.mubr.f32.gmra.mrb[0].mxu0 %v1141
        %v1209 = vpop.f32.mrb[0].mxu0
        %v1210 = vadd.f32 %v1137, %v1209
        %v1211 = vpop.f32.mrb[0].mxu0
        %1212 = vdwg.mxu0
        %v1213 = vmul.f32 %v1210, %v1066
        %v1214 = vld [vmem:[#allocation4] sm:$0xff]
        %v1216 = vsel %vm891, %v1213, 0
        %1218 = vmatprep.subr.mxu0 0.0
        %1219 = vmatpush1.msra.mxu0 %v520
        %1220 = vmatprep.subr.mxu0 0.0
        %1221 = vmatpush1.msra.mxu0 %v521
        %1222 = vmatprep.subr.mxu0 0.0
        %1223 = vmatpush1.msra.mxu0 %v522
        %1224 = vmatprep.subr.mxu0 0.0
        %1225 = vmatpush1.msra.mxu0 %v523
        %1226 = vmatprep.subr.mxu0 0.0
        %1227 = vmatpush1.msra.mxu0 %v524
        %1228 = vmatprep.subr.mxu0 0.0
        %1229 = vmatpush1.msra.mxu0 %v525
        %1230 = vmatprep.subr.mxu0 0.0
        %1231 = vmatpush1.msra.mxu0 %v526
        %1232 = vmatprep.subr.mxu0 0.0
        %1233 = vmatpush1.msra.mxu0 %v527
        %1234 = vmatprep.subr.mxu0 0.0
        %1235 = vmatpush1.msra.mxu0 0.0
        %1236 = vmatprep.subr.mxu0 0.0
        %1237 = vmatpush1.msra.mxu0 0.0
        %1238 = vmatprep.subr.mxu0 0.0
        %1239 = vmatpush1.msra.mxu0 0.0
        %1240 = vmatprep.subr.mxu0 0.0
        %1241 = vmatpush1.msra.mxu0 0.0
        %1242 = vmatprep.subr.mxu0 0.0
        %1243 = vmatpush1.msra.mxu0 0.0
        %1244 = vmatprep.subr.mxu0 0.0
        %1245 = vmatpush1.msra.mxu0 0.0
        %1246 = vmatprep.subr.mxu0 0.0
        %1247 = vmatpush1.msra.mxu0 0.0
        %1248 = vmatprep.subr.mxu0 0.0
        %1249 = vmatpush1.msra.mxu0 0.0
        %1250 = vmatprep.subr.mxu0 0.0
        %1251 = vmatpush1.msra.mxu0 0.0
        %1252 = vmatprep.subr.mxu0 0.0
        %1253 = vmatpush1.msra.mxu0 0.0
        %1254 = vmatprep.subr.mxu0 0.0
        %1255 = vmatpush1.msra.mxu0 0.0
        %1256 = vmatprep.subr.mxu0 0.0
        %1257 = vmatpush1.msra.mxu0 0.0
        %1258 = vmatprep.subr.mxu0 0.0
        %1259 = vmatpush1.msra.mxu0 0.0
        %1260 = vmatprep.subr.mxu0 0.0
        %1261 = vmatpush1.msra.mxu0 0.0
        %1262 = vmatprep.subr.mxu0 0.0
        %1263 = vmatpush1.msra.mxu0 0.0
        %1264 = vmatprep.subr.mxu0 0.0
        %1265 = vmatpush1.msra.mxu0 0.0
        %1266 = vmatprep.subr.mxu0 0.0
        %1267 = vmatpush1.msra.mxu0 0.0
        %1268 = vmatprep.subr.mxu0 0.0
        %1269 = vmatpush1.msra.mxu0 0.0
        %1270 = vmatprep.subr.mxu0 0.0
        %1271 = vmatpush1.msra.mxu0 0.0
        %1272 = vmatprep.subr.mxu0 0.0
        %1273 = vmatpush1.msra.mxu0 0.0
        %1274 = vmatprep.subr.mxu0 0.0
        %1275 = vmatpush1.msra.mxu0 0.0
        %1276 = vmatprep.subr.mxu0 0.0
        %1277 = vmatpush1.msra.mxu0 0.0
        %1278 = vmatprep.subr.mxu0 0.0
        %1279 = vmatpush1.msra.mxu0 0.0
        %1280 = vmatprep.subr.mxu0 0.0
        %1281 = vmatpush1.msra.mxu0 0.0
        %1282 = vmatprep.mubr.f32.mxu0 0.0
        %1283 = vmatmul.mubr.f32.gmra.mrb[0].mxu0 %v1216
        %v1284 = vpop.f32.mrb[0].mxu0
        %v1285 = vadd.f32 0.0, %v1284
        %v1286 = vpop.f32.mrb[0].mxu0
        %1287 = vdwg.mxu0
        %v1288 = vadd.f32 %v1214, %v1285
        %1289 = vst [vmem:[#allocation4] sm:$0xff] %v1288
        %p1290 = scmp.eq.s32.totalorder %s29, 1
        // Predicated region
        $region65: #{tpu_custom_call.1} parent=59 // pred_check
          %p1291 = pneg %p1290
        $region66: #{tpu_custom_call.1} parent=59 // pred_check_branch
          %1293 = sbr.rel (%p1291) target = $region68
        $region67: #{tpu_custom_call.1} parent=59 // pred_region
          %v1294 = vld [vmem:[#allocation4] sm:$0xff]
          %1295 = vst [vmem:[%s377] sm:$0xff] %v1294
        $region68: #{tpu_custom_call.1} parent=59 // pred_fallthru
          _
        %s1296 = sand.u32 %s264, 1
        %s1297 = scalar_lea.sflag [#allocation6], %s1296
        %s1298 = sand.u32 %s264, 1
        %s1299 = smul.addr %s1298, 8
        %s1300 = scalar_lea.vmem [#allocation5], %s1299
        // Predicated region
        $region69: #{tpu_custom_call.1} parent=59 // pred_check
          %p1301 = pneg %p274
        $region70: #{tpu_custom_call.1} parent=59 // pred_check_branch
          %1303 = sbr.rel (%p1301) target = $region72
        $region71: #{tpu_custom_call.1} parent=59 // pred_region
          %s1305 = ssub.s32 128, 128
          %1306 = vsyncadd %s1297, %s1305
          %s1307 = smul.addr %s28, 128
          %s1308 = scalar_lea.hbm %s10, %s1307
          %s1310 = sshll.u32 %s1300, 4
          %s1311 = int_to_ptr.vmem [resolvable:$true] %s1310
          %1313 = dma.vmem_to_hbm [thread:$0]  %s1311, 128, %s1308, %s1297
        $region72: #{tpu_custom_call.1} parent=59 // pred_fallthru
          _
      $region60: #{tpu_custom_call.1} parent=5 // pred_fallthru
        _
      %p1314 = scmp.le.s32.totalorder 2, %s19
      // Predicated region
      $region73: #{tpu_custom_call.1} parent=5 // pred_check
        %p1315 = pneg %p1314
      $region74: #{tpu_custom_call.1} parent=5 // pred_check_branch
        %1317 = sbr.rel (%p1315) target = $region76
      $region75: #{tpu_custom_call.1} parent=5 // pred_region
        %s1318 = ssub.s32 %s19, 2
        // Predicated region
        $region77: #{tpu_custom_call.1} parent=75 // pred_check
          %p1319 = pneg %p280
        $region78: #{tpu_custom_call.1} parent=75 // pred_check_branch
          %1321 = sbr.rel (%p1319) target = $region80
        $region79: #{tpu_custom_call.1} parent=75 // pred_region
          %s1322 = sand.u32 %s265, 1
          %s1323 = scalar_lea.sflag [#allocation6], %s1322
          %s1324 = sand.u32 %s265, 1
          %s1325 = smul.addr %s1324, 8
          %s1326 = scalar_lea.vmem [#allocation5], %s1325
          %1327 = dma.done %s1323, 128
        $region80: #{tpu_custom_call.1} parent=75 // pred_fallthru
          _
      $region76: #{tpu_custom_call.1} parent=5 // pred_fallthru
        _
    $region6: #{tpu_custom_call.1} parent=1 // loop_footer
      %s23 = sadd.s32 1, %s19
    $region7: #{tpu_custom_call.1} parent=1 // loop_footer_branch
      %18 = sbr.rel target = $region3
    $region8: #{tpu_custom_call.1} parent=1 // loop_exit
      _
    %1328 = vsyncpa [#allocation6], 1
    %s1329 = scalar_lea.sflag [#allocation6], 1
    %1330 = vsyncpa %s1329, 1

</llo_original>
